<compile_context>
chip_gen: v7x
topology: tpu7x:2x2x1
jax: 0.10.0
libtpu: 0.0.40
codegen_flags: <defaults>
</compile_context>

<pallas_src>
import jax
import jax.numpy as jnp
import numpy as np
from jax.experimental import pallas as pl
from jax.experimental.pallas import tpu as pltpu

H = W = 28
D = H * W  # 784


def _neighbor_mask() -> np.ndarray:
    """4-neighbor pixel adjacency mask (same as get_precision_matrix_mask)."""
    m = np.zeros((D, D), np.float32)

    def idx(y, x):
        return W * y + x

    for y in range(H):
        for x in range(W):
            m[idx(y, x), idx(y, x)] = 1.0
            if x + 1 < W:
                m[idx(y, x), idx(y, x + 1)] = 1.0
            if x - 1 >= 0:
                m[idx(y, x), idx(y, x - 1)] = 1.0
            if y + 1 < H:
                m[idx(y, x), idx(y + 1, x)] = 1.0
            if y - 1 >= 0:
                m[idx(y, x), idx(y - 1, x)] = 1.0
    return m


def _ebm_kernel(x_ref, p_ref, logz_ref, out_ref):
    # x_ref:   [B_TILE, D] VMEM  (streamed per grid step)
    # p_ref:   [D, D]      VMEM  (resident: same block index every step)
    # logz_ref:[1, 1]      SMEM  scalar
    # out_ref: [B_TILE, 1] VMEM
    x = x_ref[...]                                                    # [B_TILE, D]
    xp = jnp.dot(x, p_ref[...], preferred_element_type=jnp.float32)  # MXU
    q = jnp.sum(xp * x, axis=-1, keepdims=True)                      # VPU + XLU
    out_ref[...] = -0.5 * q - logz_ref[0, 0]


def _round_up(n: int, m: int) -> int:
    return ((n + m - 1) // m) * m


def gaussian_ebm_forward(x, precision_matrix, mask, log_z, *,
                         mask_precision_matrix=False, max_b_tile=512):
    """x: [B, 784] -> log probabilities [B] (float32)."""
    x = jnp.asarray(x, jnp.float32)
    B, d = x.shape
    assert d == D

    # Fold the static mask into P outside the hot path so the kernel streams
    # only one [784, 784] matrix and does no per-call elementwise multiply.
    p_eff = jnp.asarray(precision_matrix, jnp.float32)
    if mask_precision_matrix:
        # TODO(synk): exploit the pentadiagonal structure of P*mask (5 bands of
        # length 784 + pltpu.roll on the lane axis) to drop the MXU matmul and
        # cut P traffic ~150x on the masked path.
        p_eff = p_eff * jnp.asarray(mask, jnp.float32)

    # Adaptive batch tile: sublane-aligned (multiple of 8); capped at
    # max_b_tile so double-buffered x tiles stay comfortably inside VMEM.
    if B <= max_b_tile:
        b_tile = _round_up(B, 8)
    else:
        b_tile = max_b_tile                      # multiple of 8 (and of 128)
    b_pad = _round_up(B, b_tile)
    if b_pad != B:
        x = jnp.pad(x, ((0, b_pad - B), (0, 0)))
    num_tiles = b_pad // b_tile

    log_z_arr = jnp.asarray(log_z, jnp.float32).reshape(1, 1)

    out = pl.pallas_call(
        _ebm_kernel,
        out_shape=jax.ShapeDtypeStruct((b_pad, 1), jnp.float32),
        grid=(num_tiles,),
        in_specs=[
            # x: streamed per batch tile (double-buffered by the pipeline)
            pl.BlockSpec((b_tile, D), lambda i: (i, 0)),
            # P: constant block index -> stays VMEM-resident across the grid
            pl.BlockSpec((D, D), lambda i: (0, 0)),
            # log_Z: scalar in SMEM
            pl.BlockSpec((1, 1), lambda i: (0, 0),
                         memory_space=pltpu.MemorySpace.SMEM),
        ],
        out_specs=pl.BlockSpec((b_tile, 1), lambda i: (i, 0)),
        compiler_params=pltpu.CompilerParams(
            dimension_semantics=("parallel",)),   # v7x: shard batch over 2 TCs
    )(x, p_eff, log_z_arr)

    return out[:B, 0]


if __name__ == "__main__":
    key = jax.random.PRNGKey(0)

    # --- deterministic parameter init (mirrors __init__) -------------------
    mask = jnp.asarray(_neighbor_mask())                         # [784, 784]
    # precision_matrix_init = identity (module default) plus a tiny symmetric
    # deterministic perturbation so the matmul is non-trivial.
    pert = 0.001 * mask
    precision = jnp.eye(D, dtype=jnp.float32) + 0.5 * (pert + pert.T)
    sign, neg_logdet = jnp.linalg.slogdet(precision)
    init_log_Z = D / 2.0 * np.log(2.0 * np.pi) - 0.5 * neg_logdet
    log_Z = jnp.asarray(init_log_Z, jnp.float32)

    # --- inputs -------------------------------------------------------------
    B = 8
    x = jax.random.normal(key, (B, D), dtype=jnp.float32)

    # --- run kernel (unmasked path) -----------------------------------------
    out = gaussian_ebm_forward(x, precision, mask, log_Z,
                               mask_precision_matrix=False)
    out = jax.block_until_ready(out)
    ref = -0.5 * jnp.einsum("bi,ij,bj->b", x, precision, x) - log_Z
    np.testing.assert_allclose(np.asarray(out), np.asarray(ref),
                               rtol=1e-5, atol=1e-4)

    # --- masked-precision path ----------------------------------------------
    out_m = jax.block_until_ready(
        gaussian_ebm_forward(x, precision, mask, log_Z,
                             mask_precision_matrix=True))
    ref_m = -0.5 * jnp.einsum("bi,ij,bj->b", x, precision * mask, x) - log_Z
    np.testing.assert_allclose(np.asarray(out_m), np.asarray(ref_m),
                               rtol=1e-5, atol=1e-4)

    assert out.shape == (B,)
    print("KERNEL_OK")
</pallas_src>

<mosaic_0001>
module attributes {stable_mosaic.version = 11 : i64} {
  func.func @_ebm_kernel(%arg0: i32, %arg1: memref<8x784xf32, #tpu.memory_space<vmem>>, %arg2: memref<784x784xf32, #tpu.memory_space<vmem>>, %arg3: memref<1x1xf32, #tpu.memory_space<smem>>, %arg4: memref<8x1xf32, #tpu.memory_space<vmem>>) attributes {dimension_semantics = [#tpu.dimension_semantics<parallel>], iteration_bounds = array<i64: 1>, scalar_prefetch = 0 : i64, scratch_operands = 0 : i64, tpu.core_type = #tpu.core_type<tc>, window_params = [{transform_indices = @transform_0, window_bounds = array<i64: 8, 784>}, {pipeline_mode = #tpu.pipeline_mode<synchronous>, transform_indices = @transform_1, window_bounds = array<i64: 784, 784>}, {transform_indices = @transform_2, window_bounds = array<i64: 1, 1>}, {transform_indices = @transform_3, window_bounds = array<i64: 8, 1>}]} {
    %c0 = arith.constant 0 : index
    %c0_0 = arith.constant 0 : index
    %0 = vector.load %arg1[%c0, %c0_0] : memref<8x784xf32, #tpu.memory_space<vmem>>, vector<8x784xf32>
    %c0_1 = arith.constant 0 : index
    %c0_2 = arith.constant 0 : index
    %1 = vector.load %arg2[%c0_1, %c0_2] : memref<784x784xf32, #tpu.memory_space<vmem>>, vector<784x784xf32>
    %cst = arith.constant dense<0.000000e+00> : vector<8x784xf32>
    %2 = tpu.matmul %0, %1, %cst {dimension_numbers = #tpu.dot_dimension_numbers<[1], [0], [0], [1], [0, 0, 1, 1], [], []>} : vector<8x784xf32>, vector<784x784xf32>, vector<8x784xf32> -> vector<8x784xf32>
    %3 = arith.mulf %2, %0 : vector<8x784xf32>
    %cst_3 = arith.constant dense<0.000000e+00> : vector<8xf32>
    %4 = vector.multi_reduction <add>, %3, %cst_3 [1] : vector<8x784xf32> to vector<8xf32>
    %5 = vector.shape_cast %4 : vector<8xf32> to vector<8x1xf32>
    %cst_4 = arith.constant -5.000000e-01 : f32
    %6 = vector.broadcast %cst_4 : f32 to vector<8x1xf32>
    %7 = arith.mulf %6, %5 : vector<8x1xf32>
    %c0_5 = arith.constant 0 : index
    %c0_6 = arith.constant 0 : index
    %8 = memref.load %arg3[%c0_5, %c0_6] : memref<1x1xf32, #tpu.memory_space<smem>>
    %9 = vector.broadcast %8 : f32 to vector<8x1xf32>
    %10 = arith.subf %7, %9 : vector<8x1xf32>
    %c0_7 = arith.constant 0 : index
    %c0_8 = arith.constant 0 : index
    %11 = vector.load %arg4[%c0_7, %c0_8] : memref<8x1xf32, #tpu.memory_space<vmem>>, vector<8x1xf32>
    tpu.vector_store %arg4[%c0_7, %c0_8], %10 {strides = array<i32>} : memref<8x1xf32, #tpu.memory_space<vmem>>, vector<8x1xf32>,
    return
  }
  func.func @transform_0(%arg0: i32) -> (i32, i32) {
    %c0_i32 = arith.constant 0 : i32
    %c0_i32_0 = arith.constant 0 : i32
    return %arg0, %c0_i32 : i32, i32
  }
  func.func @transform_1(%arg0: i32) -> (i32, i32) {
    %c0_i32 = arith.constant 0 : i32
    %c0_i32_0 = arith.constant 0 : i32
    %c0_i32_1 = arith.constant 0 : i32
    return %c0_i32, %c0_i32_0 : i32, i32
  }
  func.func @transform_2(%arg0: i32) -> (i32, i32) {
    %c0_i32 = arith.constant 0 : i32
    %c0_i32_0 = arith.constant 0 : i32
    %c0_i32_1 = arith.constant 0 : i32
    return %c0_i32, %c0_i32_0 : i32, i32
  }
  func.func @transform_3(%arg0: i32) -> (i32, i32) {
    %c0_i32 = arith.constant 0 : i32
    %c0_i32_0 = arith.constant 0 : i32
    return %arg0, %c0_i32 : i32, i32
  }
}

</mosaic_0001>

<llo_original>
// kernel: tpu_custom_call.1
$region0: #{tpu_custom_call.1}
  #allocation0 [shape = 'u32[]', space=smem, size = 0x4, offset = 0x4, fixed_abs, tag = 'smem constant byte address 0x4 - core index']
  #allocation1 [shape = 'u32[144,128]{1,0:T(1,128)}', space=vmem, size = 0x12000, scoped, tag = 'internal scratch']
  #allocation2 [shape = 'f32[1,1]{1,0:T(1,128)S(6)}', space=smem, size = 0x200, scoped, tag = 'scoped memory for tpu_custom_call.1']
  %s0 = inlined_call_operand.hbm [shape: f32[8,784], index: 0, kind: input, shape index: {}]
  %s1 = inlined_call_operand.hbm [shape: f32[784,784], index: 1, kind: input, shape index: {}]
  %s2 = inlined_call_operand.<no memory space> [shape: f32[1,1], index: 2, kind: input, shape index: {}]
  %s3 = inlined_call_operand.vmem [shape: f32[8,1], index: 3, kind: output, shape index: {}]
  %s4 = sld [smem:[#allocation0]]
  $region30: #{tpu_custom_call.1} parent=0
    _
  %s6 = ssub.s32 1, %s4
  %s7 = scalar_select 0, %s6, %s4
  %8 = sst [smem:[#allocation2]] %s2
  $region1: #{tpu_custom_call.1} parent=0
    #allocation3 [shape = 'u8[28672]{0}', space=vmem, size = 0x7000, scoped, tag = 'input window, operand 0, single buffered']
    #allocation4 [shape = 's32[1]{0}', space=sflag, size = 0x4, scoped, tag = 'scoped memory for tpu_custom_call.1']
    #allocation5 [shape = 'u8[2809856]{0}', space=vmem, size = 0x2ae000, scoped, tag = 'input window, operand 1, single buffered']
    #allocation6 [shape = 's32[1]{0}', space=sflag, size = 0x4, scoped, tag = 'scoped memory for tpu_custom_call.1']
    %9 = vsyncpa [#allocation4], 0
    %10 = vsyncpa [#allocation6], 0
    // Predicated region
    $region2: #{tpu_custom_call.1} parent=1 // pred_check
      _
    $region3: #{tpu_custom_call.1} parent=1 // pred_check_branch
      %12 = sbr.rel (0) target = $region5
    $region4: #{tpu_custom_call.1} parent=1 // pred_region
      %s14 = ssub.s32 896, 896
      %15 = vsyncadd [#allocation4], %s14
      %s17 = sshll.u32 [#allocation3], 4
      %s18 = int_to_ptr.vmem [resolvable:$true] %s17
      %20 = dma.hbm_to_vmem [thread:$0]  %s0, 896, %s18, [#allocation4]
    $region5: #{tpu_custom_call.1} parent=1 // pred_fallthru
      _
    // Predicated region
    $region6: #{tpu_custom_call.1} parent=1 // pred_check
      _
    $region7: #{tpu_custom_call.1} parent=1 // pred_check_branch
      %22 = sbr.rel (0) target = $region9
    $region8: #{tpu_custom_call.1} parent=1 // pred_region
      %s24 = ssub.s32 87808, 87808
      %25 = vsyncadd [#allocation6], %s24
      %s26 = sshll.u32 [#allocation5], 4
      %s27 = int_to_ptr.vmem [resolvable:$true] %s26
      %32 = dma.hbm_to_vmem [thread:$0]  %s1, 87808, %s27, [#allocation6], 896, 896, 56
    $region9: #{tpu_custom_call.1} parent=1 // pred_fallthru
      _
    // Predicated region
    $region10: #{tpu_custom_call.1} parent=1 // pred_check
      _
    $region11: #{tpu_custom_call.1} parent=1 // pred_check_branch
      %34 = sbr.rel (0) target = $region13
    $region12: #{tpu_custom_call.1} parent=1 // pred_region
      _
    $region13: #{tpu_custom_call.1} parent=1 // pred_fallthru
      _
    // Predicated region
    $region14: #{tpu_custom_call.1} parent=1 // pred_check
      _
    $region15: #{tpu_custom_call.1} parent=1 // pred_check_branch
      %36 = sbr.rel (0) target = $region17
    $region16: #{tpu_custom_call.1} parent=1 // pred_region
      %37 = dma.done [#allocation4], 896
    $region17: #{tpu_custom_call.1} parent=1 // pred_fallthru
      _
    // Predicated region
    $region18: #{tpu_custom_call.1} parent=1 // pred_check
      _
    $region19: #{tpu_custom_call.1} parent=1 // pred_check_branch
      %39 = sbr.rel (0) target = $region21
    $region20: #{tpu_custom_call.1} parent=1 // pred_region
      %40 = dma.done [#allocation6], 87808
    $region21: #{tpu_custom_call.1} parent=1 // pred_fallthru
      _
    %v41 = vld [vmem:[#allocation3] sm:$0xff]
    %v42 = vld [vmem:[#allocation3 + $0x8] sm:$0xff]
    %v43 = vld [vmem:[#allocation3 + $0x10] sm:$0xff]
    %v44 = vld [vmem:[#allocation3 + $0x18] sm:$0xff]
    %v45 = vld [vmem:[#allocation3 + $0x20] sm:$0xff]
    %v46 = vld [vmem:[#allocation3 + $0x28] sm:$0xff]
    %v47 = vld [vmem:[#allocation3 + $0x30] sm:$0xff]
    %v48 = vld [vmem:[#allocation5] sm:$0xff]
    %v49 = vld [vmem:[#allocation5 + $0x8] sm:$0xff]
    %v50 = vld [vmem:[#allocation5 + $0x10] sm:$0xff]
    %v51 = vld [vmem:[#allocation5 + $0x18] sm:$0xff]
    %v52 = vld [vmem:[#allocation5 + $0x20] sm:$0xff]
    %v53 = vld [vmem:[#allocation5 + $0x28] sm:$0xff]
    %v54 = vld [vmem:[#allocation5 + $0x30] sm:$0xff]
    %v55 = vld [vmem:[#allocation5 + $0x38] sm:$0xff]
    %v56 = vld [vmem:[#allocation5 + $0x40] sm:$0xff]
    %v57 = vld [vmem:[#allocation5 + $0x48] sm:$0xff]
    %v58 = vld [vmem:[#allocation5 + $0x50] sm:$0xff]
    %v59 = vld [vmem:[#allocation5 + $0x58] sm:$0xff]
    %v60 = vld [vmem:[#allocation5 + $0x60] sm:$0xff]
    %v61 = vld [vmem:[#allocation5 + $0x68] sm:$0xff]
    %v62 = vld [vmem:[#allocation5 + $0x70] sm:$0xff]
    %v63 = vld [vmem:[#allocation5 + $0x78] sm:$0xff]
    %v64 = vld [vmem:[#allocation5 + $0x80] sm:$0xff]
    %v65 = vld [vmem:[#allocation5 + $0x88] sm:$0xff]
    %v66 = vld [vmem:[#allocation5 + $0x90] sm:$0xff]
    %v67 = vld [vmem:[#allocation5 + $0x98] sm:$0xff]
    %v68 = vld [vmem:[#allocation5 + $0xa0] sm:$0xff]
    %v69 = vld [vmem:[#allocation5 + $0xa8] sm:$0xff]
    %v70 = vld [vmem:[#allocation5 + $0xb0] sm:$0xff]
    %v71 = vld [vmem:[#allocation5 + $0xb8] sm:$0xff]
    %v72 = vld [vmem:[#allocation5 + $0xc0] sm:$0xff]
    %v73 = vld [vmem:[#allocation5 + $0xc8] sm:$0xff]
    %v74 = vld [vmem:[#allocation5 + $0xd0] sm:$0xff]
    %v75 = vld [vmem:[#allocation5 + $0xd8] sm:$0xff]
    %v76 = vld [vmem:[#allocation5 + $0xe0] sm:$0xff]
    %v77 = vld [vmem:[#allocation5 + $0xe8] sm:$0xff]
    %v78 = vld [vmem:[#allocation5 + $0xf0] sm:$0xff]
    %v79 = vld [vmem:[#allocation5 + $0xf8] sm:$0xff]
    %v80 = vld [vmem:[#allocation5 + $0x100] sm:$0xff]
    %v81 = vld [vmem:[#allocation5 + $0x108] sm:$0xff]
    %v82 = vld [vmem:[#allocation5 + $0x110] sm:$0xff]
    %v83 = vld [vmem:[#allocation5 + $0x118] sm:$0xff]
    %v84 = vld [vmem:[#allocation5 + $0x120] sm:$0xff]
    %v85 = vld [vmem:[#allocation5 + $0x128] sm:$0xff]
    %v86 = vld [vmem:[#allocation5 + $0x130] sm:$0xff]
    %v87 = vld [vmem:[#allocation5 + $0x138] sm:$0xff]
    %v88 = vld [vmem:[#allocation5 + $0x140] sm:$0xff]
    %v89 = vld [vmem:[#allocation5 + $0x148] sm:$0xff]
    %v90 = vld [vmem:[#allocation5 + $0x150] sm:$0xff]
    %v91 = vld [vmem:[#allocation5 + $0x158] sm:$0xff]
    %v92 = vld [vmem:[#allocation5 + $0x160] sm:$0xff]
    %v93 = vld [vmem:[#allocation5 + $0x168] sm:$0xff]
    %v94 = vld [vmem:[#allocation5 + $0x170] sm:$0xff]
    %v95 = vld [vmem:[#allocation5 + $0x178] sm:$0xff]
    %v96 = vld [vmem:[#allocation5 + $0x180] sm:$0xff]
    %v97 = vld [vmem:[#allocation5 + $0x188] sm:$0xff]
    %v98 = vld [vmem:[#allocation5 + $0x190] sm:$0xff]
    %v99 = vld [vmem:[#allocation5 + $0x198] sm:$0xff]
    %v100 = vld [vmem:[#allocation5 + $0x1a0] sm:$0xff]
    %v101 = vld [vmem:[#allocation5 + $0x1a8] sm:$0xff]
    %v102 = vld [vmem:[#allocation5 + $0x1b0] sm:$0xff]
    %v103 = vld [vmem:[#allocation5 + $0x1b8] sm:$0xff]
    %v104 = vld [vmem:[#allocation5 + $0x1c0] sm:$0xff]
    %v105 = vld [vmem:[#allocation5 + $0x1c8] sm:$0xff]
    %v106 = vld [vmem:[#allocation5 + $0x1d0] sm:$0xff]
    %v107 = vld [vmem:[#allocation5 + $0x1d8] sm:$0xff]
    %v108 = vld [vmem:[#allocation5 + $0x1e0] sm:$0xff]
    %v109 = vld [vmem:[#allocation5 + $0x1e8] sm:$0xff]
    %v110 = vld [vmem:[#allocation5 + $0x1f0] sm:$0xff]
    %v111 = vld [vmem:[#allocation5 + $0x1f8] sm:$0xff]
    %v112 = vld [vmem:[#allocation5 + $0x200] sm:$0xff]
    %v113 = vld [vmem:[#allocation5 + $0x208] sm:$0xff]
    %v114 = vld [vmem:[#allocation5 + $0x210] sm:$0xff]
    %v115 = vld [vmem:[#allocation5 + $0x218] sm:$0xff]
    %v116 = vld [vmem:[#allocation5 + $0x220] sm:$0xff]
    %v117 = vld [vmem:[#allocation5 + $0x228] sm:$0xff]
    %v118 = vld [vmem:[#allocation5 + $0x230] sm:$0xff]
    %v119 = vld [vmem:[#allocation5 + $0x238] sm:$0xff]
    %v120 = vld [vmem:[#allocation5 + $0x240] sm:$0xff]
    %v121 = vld [vmem:[#allocation5 + $0x248] sm:$0xff]
    %v122 = vld [vmem:[#allocation5 + $0x250] sm:$0xff]
    %v123 = vld [vmem:[#allocation5 + $0x258] sm:$0xff]
    %v124 = vld [vmem:[#allocation5 + $0x260] sm:$0xff]
    %v125 = vld [vmem:[#allocation5 + $0x268] sm:$0xff]
    %v126 = vld [vmem:[#allocation5 + $0x270] sm:$0xff]
    %v127 = vld [vmem:[#allocation5 + $0x278] sm:$0xff]
    %v128 = vld [vmem:[#allocation5 + $0x280] sm:$0xff]
    %v129 = vld [vmem:[#allocation5 + $0x288] sm:$0xff]
    %v130 = vld [vmem:[#allocation5 + $0x290] sm:$0xff]
    %v131 = vld [vmem:[#allocation5 + $0x298] sm:$0xff]
    %v132 = vld [vmem:[#allocation5 + $0x2a0] sm:$0xff]
    %v133 = vld [vmem:[#allocation5 + $0x2a8] sm:$0xff]
    %v134 = vld [vmem:[#allocation5 + $0x2b0] sm:$0xff]
    %v135 = vld [vmem:[#allocation5 + $0x2b8] sm:$0xff]
    %v136 = vld [vmem:[#allocation5 + $0x2c0] sm:$0xff]
    %v137 = vld [vmem:[#allocation5 + $0x2c8] sm:$0xff]
    %v138 = vld [vmem:[#allocation5 + $0x2d0] sm:$0xff]
    %v139 = vld [vmem:[#allocation5 + $0x2d8] sm:$0xff]
    %v140 = vld [vmem:[#allocation5 + $0x2e0] sm:$0xff]
    %v141 = vld [vmem:[#allocation5 + $0x2e8] sm:$0xff]
    %v142 = vld [vmem:[#allocation5 + $0x2f0] sm:$0xff]
    %v143 = vld [vmem:[#allocation5 + $0x2f8] sm:$0xff]
    %v144 = vld [vmem:[#allocation5 + $0x300] sm:$0xff]
    %v145 = vld [vmem:[#allocation5 + $0x308] sm:$0xff]
    %v146 = vld [vmem:[#allocation5 + $0x310] sm:$0xff]
    %v147 = vld [vmem:[#allocation5 + $0x318] sm:$0xff]
    %v148 = vld [vmem:[#allocation5 + $0x320] sm:$0xff]
    %v149 = vld [vmem:[#allocation5 + $0x328] sm:$0xff]
    %v150 = vld [vmem:[#allocation5 + $0x330] sm:$0xff]
    %v151 = vld [vmem:[#allocation5 + $0x338] sm:$0xff]
    %v152 = vld [vmem:[#allocation5 + $0x340] sm:$0xff]
    %v153 = vld [vmem:[#allocation5 + $0x348] sm:$0xff]
    %v154 = vld [vmem:[#allocation5 + $0x350] sm:$0xff]
    %v155 = vld [vmem:[#allocation5 + $0x358] sm:$0xff]
    %v156 = vld [vmem:[#allocation5 + $0x360] sm:$0xff]
    %v157 = vld [vmem:[#allocation5 + $0x368] sm:$0xff]
    %v158 = vld [vmem:[#allocation5 + $0x370] sm:$0xff]
    %v159 = vld [vmem:[#allocation5 + $0x378] sm:$0xff]
    %v160 = vld [vmem:[#allocation5 + $0x380] sm:$0xff]
    %v161 = vld [vmem:[#allocation5 + $0x388] sm:$0xff]
    %v162 = vld [vmem:[#allocation5 + $0x390] sm:$0xff]
    %v163 = vld [vmem:[#allocation5 + $0x398] sm:$0xff]
    %v164 = vld [vmem:[#allocation5 + $0x3a0] sm:$0xff]
    %v165 = vld [vmem:[#allocation5 + $0x3a8] sm:$0xff]
    %v166 = vld [vmem:[#allocation5 + $0x3b0] sm:$0xff]
    %v167 = vld [vmem:[#allocation5 + $0x3b8] sm:$0xff]
    %v168 = vld [vmem:[#allocation5 + $0x3c0] sm:$0xff]
    %v169 = vld [vmem:[#allocation5 + $0x3c8] sm:$0xff]
    %v170 = vld [vmem:[#allocation5 + $0x3d0] sm:$0xff]
    %v171 = vld [vmem:[#allocation5 + $0x3d8] sm:$0xff]
    %v172 = vld [vmem:[#allocation5 + $0x3e0] sm:$0xff]
    %v173 = vld [vmem:[#allocation5 + $0x3e8] sm:$0xff]
    %v174 = vld [vmem:[#allocation5 + $0x3f0] sm:$0xff]
    %v175 = vld [vmem:[#allocation5 + $0x3f8] sm:$0xff]
    %v176 = vld [vmem:[#allocation5 + $0x400] sm:$0xff]
    %v177 = vld [vmem:[#allocation5 + $0x408] sm:$0xff]
    %v178 = vld [vmem:[#allocation5 + $0x410] sm:$0xff]
    %v179 = vld [vmem:[#allocation5 + $0x418] sm:$0xff]
    %v180 = vld [vmem:[#allocation5 + $0x420] sm:$0xff]
    %v181 = vld [vmem:[#allocation5 + $0x428] sm:$0xff]
    %v182 = vld [vmem:[#allocation5 + $0x430] sm:$0xff]
    %v183 = vld [vmem:[#allocation5 + $0x438] sm:$0xff]
    %v184 = vld [vmem:[#allocation5 + $0x440] sm:$0xff]
    %v185 = vld [vmem:[#allocation5 + $0x448] sm:$0xff]
    %v186 = vld [vmem:[#allocation5 + $0x450] sm:$0xff]
    %v187 = vld [vmem:[#allocation5 + $0x458] sm:$0xff]
    %v188 = vld [vmem:[#allocation5 + $0x460] sm:$0xff]
    %v189 = vld [vmem:[#allocation5 + $0x468] sm:$0xff]
    %v190 = vld [vmem:[#allocation5 + $0x470] sm:$0xff]
    %v191 = vld [vmem:[#allocation5 + $0x478] sm:$0xff]
    %v192 = vld [vmem:[#allocation5 + $0x480] sm:$0xff]
    %v193 = vld [vmem:[#allocation5 + $0x488] sm:$0xff]
    %v194 = vld [vmem:[#allocation5 + $0x490] sm:$0xff]
    %v195 = vld [vmem:[#allocation5 + $0x498] sm:$0xff]
    %v196 = vld [vmem:[#allocation5 + $0x4a0] sm:$0xff]
    %v197 = vld [vmem:[#allocation5 + $0x4a8] sm:$0xff]
    %v198 = vld [vmem:[#allocation5 + $0x4b0] sm:$0xff]
    %v199 = vld [vmem:[#allocation5 + $0x4b8] sm:$0xff]
    %v200 = vld [vmem:[#allocation5 + $0x4c0] sm:$0xff]
    %v201 = vld [vmem:[#allocation5 + $0x4c8] sm:$0xff]
    %v202 = vld [vmem:[#allocation5 + $0x4d0] sm:$0xff]
    %v203 = vld [vmem:[#allocation5 + $0x4d8] sm:$0xff]
    %v204 = vld [vmem:[#allocation5 + $0x4e0] sm:$0xff]
    %v205 = vld [vmem:[#allocation5 + $0x4e8] sm:$0xff]
    %v206 = vld [vmem:[#allocation5 + $0x4f0] sm:$0xff]
    %v207 = vld [vmem:[#allocation5 + $0x4f8] sm:$0xff]
    %v208 = vld [vmem:[#allocation5 + $0x500] sm:$0xff]
    %v209 = vld [vmem:[#allocation5 + $0x508] sm:$0xff]
    %v210 = vld [vmem:[#allocation5 + $0x510] sm:$0xff]
    %v211 = vld [vmem:[#allocation5 + $0x518] sm:$0xff]
    %v212 = vld [vmem:[#allocation5 + $0x520] sm:$0xff]
    %v213 = vld [vmem:[#allocation5 + $0x528] sm:$0xff]
    %v214 = vld [vmem:[#allocation5 + $0x530] sm:$0xff]
    %v215 = vld [vmem:[#allocation5 + $0x538] sm:$0xff]
    %v216 = vld [vmem:[#allocation5 + $0x540] sm:$0xff]
    %v217 = vld [vmem:[#allocation5 + $0x548] sm:$0xff]
    %v218 = vld [vmem:[#allocation5 + $0x550] sm:$0xff]
    %v219 = vld [vmem:[#allocation5 + $0x558] sm:$0xff]
    %v220 = vld [vmem:[#allocation5 + $0x560] sm:$0xff]
    %v221 = vld [vmem:[#allocation5 + $0x568] sm:$0xff]
    %v222 = vld [vmem:[#allocation5 + $0x570] sm:$0xff]
    %v223 = vld [vmem:[#allocation5 + $0x578] sm:$0xff]
    %v224 = vld [vmem:[#allocation5 + $0x580] sm:$0xff]
    %v225 = vld [vmem:[#allocation5 + $0x588] sm:$0xff]
    %v226 = vld [vmem:[#allocation5 + $0x590] sm:$0xff]
    %v227 = vld [vmem:[#allocation5 + $0x598] sm:$0xff]
    %v228 = vld [vmem:[#allocation5 + $0x5a0] sm:$0xff]
    %v229 = vld [vmem:[#allocation5 + $0x5a8] sm:$0xff]
    %v230 = vld [vmem:[#allocation5 + $0x5b0] sm:$0xff]
    %v231 = vld [vmem:[#allocation5 + $0x5b8] sm:$0xff]
    %v232 = vld [vmem:[#allocation5 + $0x5c0] sm:$0xff]
    %v233 = vld [vmem:[#allocation5 + $0x5c8] sm:$0xff]
    %v234 = vld [vmem:[#allocation5 + $0x5d0] sm:$0xff]
    %v235 = vld [vmem:[#allocation5 + $0x5d8] sm:$0xff]
    %v236 = vld [vmem:[#allocation5 + $0x5e0] sm:$0xff]
    %v237 = vld [vmem:[#allocation5 + $0x5e8] sm:$0xff]
    %v238 = vld [vmem:[#allocation5 + $0x5f0] sm:$0xff]
    %v239 = vld [vmem:[#allocation5 + $0x5f8] sm:$0xff]
    %v240 = vld [vmem:[#allocation5 + $0x600] sm:$0xff]
    %v241 = vld [vmem:[#allocation5 + $0x608] sm:$0xff]
    %v242 = vld [vmem:[#allocation5 + $0x610] sm:$0xff]
    %v243 = vld [vmem:[#allocation5 + $0x618] sm:$0xff]
    %v244 = vld [vmem:[#allocation5 + $0x620] sm:$0xff]
    %v245 = vld [vmem:[#allocation5 + $0x628] sm:$0xff]
    %v246 = vld [vmem:[#allocation5 + $0x630] sm:$0xff]
    %v247 = vld [vmem:[#allocation5 + $0x638] sm:$0xff]
    %v248 = vld [vmem:[#allocation5 + $0x640] sm:$0xff]
    %v249 = vld [vmem:[#allocation5 + $0x648] sm:$0xff]
    %v250 = vld [vmem:[#allocation5 + $0x650] sm:$0xff]
    %v251 = vld [vmem:[#allocation5 + $0x658] sm:$0xff]
    %v252 = vld [vmem:[#allocation5 + $0x660] sm:$0xff]
    %v253 = vld [vmem:[#allocation5 + $0x668] sm:$0xff]
    %v254 = vld [vmem:[#allocation5 + $0x670] sm:$0xff]
    %v255 = vld [vmem:[#allocation5 + $0x678] sm:$0xff]
    %v256 = vld [vmem:[#allocation5 + $0x680] sm:$0xff]
    %v257 = vld [vmem:[#allocation5 + $0x688] sm:$0xff]
    %v258 = vld [vmem:[#allocation5 + $0x690] sm:$0xff]
    %v259 = vld [vmem:[#allocation5 + $0x698] sm:$0xff]
    %v260 = vld [vmem:[#allocation5 + $0x6a0] sm:$0xff]
    %v261 = vld [vmem:[#allocation5 + $0x6a8] sm:$0xff]
    %v262 = vld [vmem:[#allocation5 + $0x6b0] sm:$0xff]
    %v263 = vld [vmem:[#allocation5 + $0x6b8] sm:$0xff]
    %v264 = vld [vmem:[#allocation5 + $0x6c0] sm:$0xff]
    %v265 = vld [vmem:[#allocation5 + $0x6c8] sm:$0xff]
    %v266 = vld [vmem:[#allocation5 + $0x6d0] sm:$0xff]
    %v267 = vld [vmem:[#allocation5 + $0x6d8] sm:$0xff]
    %v268 = vld [vmem:[#allocation5 + $0x6e0] sm:$0xff]
    %v269 = vld [vmem:[#allocation5 + $0x6e8] sm:$0xff]
    %v270 = vld [vmem:[#allocation5 + $0x6f0] sm:$0xff]
    %v271 = vld [vmem:[#allocation5 + $0x6f8] sm:$0xff]
    %v272 = vld [vmem:[#allocation5 + $0x700] sm:$0xff]
    %v273 = vld [vmem:[#allocation5 + $0x708] sm:$0xff]
    %v274 = vld [vmem:[#allocation5 + $0x710] sm:$0xff]
    %v275 = vld [vmem:[#allocation5 + $0x718] sm:$0xff]
    %v276 = vld [vmem:[#allocation5 + $0x720] sm:$0xff]
    %v277 = vld [vmem:[#allocation5 + $0x728] sm:$0xff]
    %v278 = vld [vmem:[#allocation5 + $0x730] sm:$0xff]
    %v279 = vld [vmem:[#allocation5 + $0x738] sm:$0xff]
    %v280 = vld [vmem:[#allocation5 + $0x740] sm:$0xff]
    %v281 = vld [vmem:[#allocation5 + $0x748] sm:$0xff]
    %v282 = vld [vmem:[#allocation5 + $0x750] sm:$0xff]
    %v283 = vld [vmem:[#allocation5 + $0x758] sm:$0xff]
    %v284 = vld [vmem:[#allocation5 + $0x760] sm:$0xff]
    %v285 = vld [vmem:[#allocation5 + $0x768] sm:$0xff]
    %v286 = vld [vmem:[#allocation5 + $0x770] sm:$0xff]
    %v287 = vld [vmem:[#allocation5 + $0x778] sm:$0xff]
    %v288 = vld [vmem:[#allocation5 + $0x780] sm:$0xff]
    %v289 = vld [vmem:[#allocation5 + $0x788] sm:$0xff]
    %v290 = vld [vmem:[#allocation5 + $0x790] sm:$0xff]
    %v291 = vld [vmem:[#allocation5 + $0x798] sm:$0xff]
    %v292 = vld [vmem:[#allocation5 + $0x7a0] sm:$0xff]
    %v293 = vld [vmem:[#allocation5 + $0x7a8] sm:$0xff]
    %v294 = vld [vmem:[#allocation5 + $0x7b0] sm:$0xff]
    %v295 = vld [vmem:[#allocation5 + $0x7b8] sm:$0xff]
    %v296 = vld [vmem:[#allocation5 + $0x7c0] sm:$0xff]
    %v297 = vld [vmem:[#allocation5 + $0x7c8] sm:$0xff]
    %v298 = vld [vmem:[#allocation5 + $0x7d0] sm:$0xff]
    %v299 = vld [vmem:[#allocation5 + $0x7d8] sm:$0xff]
    %v300 = vld [vmem:[#allocation5 + $0x7e0] sm:$0xff]
    %v301 = vld [vmem:[#allocation5 + $0x7e8] sm:$0xff]
    %v302 = vld [vmem:[#allocation5 + $0x7f0] sm:$0xff]
    %v303 = vld [vmem:[#allocation5 + $0x7f8] sm:$0xff]
    %v304 = vld [vmem:[#allocation5 + $0x800] sm:$0xff]
    %v305 = vld [vmem:[#allocation5 + $0x808] sm:$0xff]
    %v306 = vld [vmem:[#allocation5 + $0x810] sm:$0xff]
    %v307 = vld [vmem:[#allocation5 + $0x818] sm:$0xff]
    %v308 = vld [vmem:[#allocation5 + $0x820] sm:$0xff]
    %v309 = vld [vmem:[#allocation5 + $0x828] sm:$0xff]
    %v310 = vld [vmem:[#allocation5 + $0x830] sm:$0xff]
    %v311 = vld [vmem:[#allocation5 + $0x838] sm:$0xff]
    %v312 = vld [vmem:[#allocation5 + $0x840] sm:$0xff]
    %v313 = vld [vmem:[#allocation5 + $0x848] sm:$0xff]
    %v314 = vld [vmem:[#allocation5 + $0x850] sm:$0xff]
    %v315 = vld [vmem:[#allocation5 + $0x858] sm:$0xff]
    %v316 = vld [vmem:[#allocation5 + $0x860] sm:$0xff]
    %v317 = vld [vmem:[#allocation5 + $0x868] sm:$0xff]
    %v318 = vld [vmem:[#allocation5 + $0x870] sm:$0xff]
    %v319 = vld [vmem:[#allocation5 + $0x878] sm:$0xff]
    %v320 = vld [vmem:[#allocation5 + $0x880] sm:$0xff]
    %v321 = vld [vmem:[#allocation5 + $0x888] sm:$0xff]
    %v322 = vld [vmem:[#allocation5 + $0x890] sm:$0xff]
    %v323 = vld [vmem:[#allocation5 + $0x898] sm:$0xff]
    %v324 = vld [vmem:[#allocation5 + $0x8a0] sm:$0xff]
    %v325 = vld [vmem:[#allocation5 + $0x8a8] sm:$0xff]
    %v326 = vld [vmem:[#allocation5 + $0x8b0] sm:$0xff]
    %v327 = vld [vmem:[#allocation5 + $0x8b8] sm:$0xff]
    %v328 = vld [vmem:[#allocation5 + $0x8c0] sm:$0xff]
    %v329 = vld [vmem:[#allocation5 + $0x8c8] sm:$0xff]
    %v330 = vld [vmem:[#allocation5 + $0x8d0] sm:$0xff]
    %v331 = vld [vmem:[#allocation5 + $0x8d8] sm:$0xff]
    %v332 = vld [vmem:[#allocation5 + $0x8e0] sm:$0xff]
    %v333 = vld [vmem:[#allocation5 + $0x8e8] sm:$0xff]
    %v334 = vld [vmem:[#allocation5 + $0x8f0] sm:$0xff]
    %v335 = vld [vmem:[#allocation5 + $0x8f8] sm:$0xff]
    %v336 = vld [vmem:[#allocation5 + $0x900] sm:$0xff]
    %v337 = vld [vmem:[#allocation5 + $0x908] sm:$0xff]
    %v338 = vld [vmem:[#allocation5 + $0x910] sm:$0xff]
    %v339 = vld [vmem:[#allocation5 + $0x918] sm:$0xff]
    %v340 = vld [vmem:[#allocation5 + $0x920] sm:$0xff]
    %v341 = vld [vmem:[#allocation5 + $0x928] sm:$0xff]
    %v342 = vld [vmem:[#allocation5 + $0x930] sm:$0xff]
    %v343 = vld [vmem:[#allocation5 + $0x938] sm:$0xff]
    %v344 = vld [vmem:[#allocation5 + $0x940] sm:$0xff]
    %v345 = vld [vmem:[#allocation5 + $0x948] sm:$0xff]
    %v346 = vld [vmem:[#allocation5 + $0x950] sm:$0xff]
    %v347 = vld [vmem:[#allocation5 + $0x958] sm:$0xff]
    %v348 = vld [vmem:[#allocation5 + $0x960] sm:$0xff]
    %v349 = vld [vmem:[#allocation5 + $0x968] sm:$0xff]
    %v350 = vld [vmem:[#allocation5 + $0x970] sm:$0xff]
    %v351 = vld [vmem:[#allocation5 + $0x978] sm:$0xff]
    %v352 = vld [vmem:[#allocation5 + $0x980] sm:$0xff]
    %v353 = vld [vmem:[#allocation5 + $0x988] sm:$0xff]
    %v354 = vld [vmem:[#allocation5 + $0x990] sm:$0xff]
    %v355 = vld [vmem:[#allocation5 + $0x998] sm:$0xff]
    %v356 = vld [vmem:[#allocation5 + $0x9a0] sm:$0xff]
    %v357 = vld [vmem:[#allocation5 + $0x9a8] sm:$0xff]
    %v358 = vld [vmem:[#allocation5 + $0x9b0] sm:$0xff]
    %v359 = vld [vmem:[#allocation5 + $0x9b8] sm:$0xff]
    %v360 = vld [vmem:[#allocation5 + $0x9c0] sm:$0xff]
    %v361 = vld [vmem:[#allocation5 + $0x9c8] sm:$0xff]
    %v362 = vld [vmem:[#allocation5 + $0x9d0] sm:$0xff]
    %v363 = vld [vmem:[#allocation5 + $0x9d8] sm:$0xff]
    %v364 = vld [vmem:[#allocation5 + $0x9e0] sm:$0xff]
    %v365 = vld [vmem:[#allocation5 + $0x9e8] sm:$0xff]
    %v366 = vld [vmem:[#allocation5 + $0x9f0] sm:$0xff]
    %v367 = vld [vmem:[#allocation5 + $0x9f8] sm:$0xff]
    %v368 = vld [vmem:[#allocation5 + $0xa00] sm:$0xff]
    %v369 = vld [vmem:[#allocation5 + $0xa08] sm:$0xff]
    %v370 = vld [vmem:[#allocation5 + $0xa10] sm:$0xff]
    %v371 = vld [vmem:[#allocation5 + $0xa18] sm:$0xff]
    %v372 = vld [vmem:[#allocation5 + $0xa20] sm:$0xff]
    %v373 = vld [vmem:[#allocation5 + $0xa28] sm:$0xff]
    %v374 = vld [vmem:[#allocation5 + $0xa30] sm:$0xff]
    %v375 = vld [vmem:[#allocation5 + $0xa38] sm:$0xff]
    %v376 = vld [vmem:[#allocation5 + $0xa40] sm:$0xff]
    %v377 = vld [vmem:[#allocation5 + $0xa48] sm:$0xff]
    %v378 = vld [vmem:[#allocation5 + $0xa50] sm:$0xff]
    %v379 = vld [vmem:[#allocation5 + $0xa58] sm:$0xff]
    %v380 = vld [vmem:[#allocation5 + $0xa60] sm:$0xff]
    %v381 = vld [vmem:[#allocation5 + $0xa68] sm:$0xff]
    %v382 = vld [vmem:[#allocation5 + $0xa70] sm:$0xff]
    %v383 = vld [vmem:[#allocation5 + $0xa78] sm:$0xff]
    %v384 = vld [vmem:[#allocation5 + $0xa80] sm:$0xff]
    %v385 = vld [vmem:[#allocation5 + $0xa88] sm:$0xff]
    %v386 = vld [vmem:[#allocation5 + $0xa90] sm:$0xff]
    %v387 = vld [vmem:[#allocation5 + $0xa98] sm:$0xff]
    %v388 = vld [vmem:[#allocation5 + $0xaa0] sm:$0xff]
    %v389 = vld [vmem:[#allocation5 + $0xaa8] sm:$0xff]
    %v390 = vld [vmem:[#allocation5 + $0xab0] sm:$0xff]
    %v391 = vld [vmem:[#allocation5 + $0xab8] sm:$0xff]
    %v392 = vld [vmem:[#allocation5 + $0xac0] sm:$0xff]
    %v393 = vld [vmem:[#allocation5 + $0xac8] sm:$0xff]
    %v394 = vld [vmem:[#allocation5 + $0xad0] sm:$0xff]
    %v395 = vld [vmem:[#allocation5 + $0xad8] sm:$0xff]
    %v396 = vld [vmem:[#allocation5 + $0xae0] sm:$0xff]
    %v397 = vld [vmem:[#allocation5 + $0xae8] sm:$0xff]
    %v398 = vld [vmem:[#allocation5 + $0xaf0] sm:$0xff]
    %v399 = vld [vmem:[#allocation5 + $0xaf8] sm:$0xff]
    %v400 = vld [vmem:[#allocation5 + $0xb00] sm:$0xff]
    %v401 = vld [vmem:[#allocation5 + $0xb08] sm:$0xff]
    %v402 = vld [vmem:[#allocation5 + $0xb10] sm:$0xff]
    %v403 = vld [vmem:[#allocation5 + $0xb18] sm:$0xff]
    %v404 = vld [vmem:[#allocation5 + $0xb20] sm:$0xff]
    %v405 = vld [vmem:[#allocation5 + $0xb28] sm:$0xff]
    %v406 = vld [vmem:[#allocation5 + $0xb30] sm:$0xff]
    %v407 = vld [vmem:[#allocation5 + $0xb38] sm:$0xff]
    %v408 = vld [vmem:[#allocation5 + $0xb40] sm:$0xff]
    %v409 = vld [vmem:[#allocation5 + $0xb48] sm:$0xff]
    %v410 = vld [vmem:[#allocation5 + $0xb50] sm:$0xff]
    %v411 = vld [vmem:[#allocation5 + $0xb58] sm:$0xff]
    %v412 = vld [vmem:[#allocation5 + $0xb60] sm:$0xff]
    %v413 = vld [vmem:[#allocation5 + $0xb68] sm:$0xff]
    %v414 = vld [vmem:[#allocation5 + $0xb70] sm:$0xff]
    %v415 = vld [vmem:[#allocation5 + $0xb78] sm:$0xff]
    %v416 = vld [vmem:[#allocation5 + $0xb80] sm:$0xff]
    %v417 = vld [vmem:[#allocation5 + $0xb88] sm:$0xff]
    %v418 = vld [vmem:[#allocation5 + $0xb90] sm:$0xff]
    %v419 = vld [vmem:[#allocation5 + $0xb98] sm:$0xff]
    %v420 = vld [vmem:[#allocation5 + $0xba0] sm:$0xff]
    %v421 = vld [vmem:[#allocation5 + $0xba8] sm:$0xff]
    %v422 = vld [vmem:[#allocation5 + $0xbb0] sm:$0xff]
    %v423 = vld [vmem:[#allocation5 + $0xbb8] sm:$0xff]
    %v424 = vld [vmem:[#allocation5 + $0xbc0] sm:$0xff]
    %v425 = vld [vmem:[#allocation5 + $0xbc8] sm:$0xff]
    %v426 = vld [vmem:[#allocation5 + $0xbd0] sm:$0xff]
    %v427 = vld [vmem:[#allocation5 + $0xbd8] sm:$0xff]
    %v428 = vld [vmem:[#allocation5 + $0xbe0] sm:$0xff]
    %v429 = vld [vmem:[#allocation5 + $0xbe8] sm:$0xff]
    %v430 = vld [vmem:[#allocation5 + $0xbf0] sm:$0xff]
    %v431 = vld [vmem:[#allocation5 + $0xbf8] sm:$0xff]
    %v432 = vld [vmem:[#allocation5 + $0xc00] sm:$0xff]
    %v433 = vld [vmem:[#allocation5 + $0xc08] sm:$0xff]
    %v434 = vld [vmem:[#allocation5 + $0xc10] sm:$0xff]
    %v435 = vld [vmem:[#allocation5 + $0xc18] sm:$0xff]
    %v436 = vld [vmem:[#allocation5 + $0xc20] sm:$0xff]
    %v437 = vld [vmem:[#allocation5 + $0xc28] sm:$0xff]
    %v438 = vld [vmem:[#allocation5 + $0xc30] sm:$0xff]
    %v439 = vld [vmem:[#allocation5 + $0xc38] sm:$0xff]
    %v440 = vld [vmem:[#allocation5 + $0xc40] sm:$0xff]
    %v441 = vld [vmem:[#allocation5 + $0xc48] sm:$0xff]
    %v442 = vld [vmem:[#allocation5 + $0xc50] sm:$0xff]
    %v443 = vld [vmem:[#allocation5 + $0xc58] sm:$0xff]
    %v444 = vld [vmem:[#allocation5 + $0xc60] sm:$0xff]
    %v445 = vld [vmem:[#allocation5 + $0xc68] sm:$0xff]
    %v446 = vld [vmem:[#allocation5 + $0xc70] sm:$0xff]
    %v447 = vld [vmem:[#allocation5 + $0xc78] sm:$0xff]
    %v448 = vld [vmem:[#allocation5 + $0xc80] sm:$0xff]
    %v449 = vld [vmem:[#allocation5 + $0xc88] sm:$0xff]
    %v450 = vld [vmem:[#allocation5 + $0xc90] sm:$0xff]
    %v451 = vld [vmem:[#allocation5 + $0xc98] sm:$0xff]
    %v452 = vld [vmem:[#allocation5 + $0xca0] sm:$0xff]
    %v453 = vld [vmem:[#allocation5 + $0xca8] sm:$0xff]
    %v454 = vld [vmem:[#allocation5 + $0xcb0] sm:$0xff]
    %v455 = vld [vmem:[#allocation5 + $0xcb8] sm:$0xff]
    %v456 = vld [vmem:[#allocation5 + $0xcc0] sm:$0xff]
    %v457 = vld [vmem:[#allocation5 + $0xcc8] sm:$0xff]
    %v458 = vld [vmem:[#allocation5 + $0xcd0] sm:$0xff]
    %v459 = vld [vmem:[#allocation5 + $0xcd8] sm:$0xff]
    %v460 = vld [vmem:[#allocation5 + $0xce0] sm:$0xff]
    %v461 = vld [vmem:[#allocation5 + $0xce8] sm:$0xff]
    %v462 = vld [vmem:[#allocation5 + $0xcf0] sm:$0xff]
    %v463 = vld [vmem:[#allocation5 + $0xcf8] sm:$0xff]
    %v464 = vld [vmem:[#allocation5 + $0xd00] sm:$0xff]
    %v465 = vld [vmem:[#allocation5 + $0xd08] sm:$0xff]
    %v466 = vld [vmem:[#allocation5 + $0xd10] sm:$0xff]
    %v467 = vld [vmem:[#allocation5 + $0xd18] sm:$0xff]
    %v468 = vld [vmem:[#allocation5 + $0xd20] sm:$0xff]
    %v469 = vld [vmem:[#allocation5 + $0xd28] sm:$0xff]
    %v470 = vld [vmem:[#allocation5 + $0xd30] sm:$0xff]
    %v471 = vld [vmem:[#allocation5 + $0xd38] sm:$0xff]
    %v472 = vld [vmem:[#allocation5 + $0xd40] sm:$0xff]
    %v473 = vld [vmem:[#allocation5 + $0xd48] sm:$0xff]
    %v474 = vld [vmem:[#allocation5 + $0xd50] sm:$0xff]
    %v475 = vld [vmem:[#allocation5 + $0xd58] sm:$0xff]
    %v476 = vld [vmem:[#allocation5 + $0xd60] sm:$0xff]
    %v477 = vld [vmem:[#allocation5 + $0xd68] sm:$0xff]
    %v478 = vld [vmem:[#allocation5 + $0xd70] sm:$0xff]
    %v479 = vld [vmem:[#allocation5 + $0xd78] sm:$0xff]
    %v480 = vld [vmem:[#allocation5 + $0xd80] sm:$0xff]
    %v481 = vld [vmem:[#allocation5 + $0xd88] sm:$0xff]
    %v482 = vld [vmem:[#allocation5 + $0xd90] sm:$0xff]
    %v483 = vld [vmem:[#allocation5 + $0xd98] sm:$0xff]
    %v484 = vld [vmem:[#allocation5 + $0xda0] sm:$0xff]
    %v485 = vld [vmem:[#allocation5 + $0xda8] sm:$0xff]
    %v486 = vld [vmem:[#allocation5 + $0xdb0] sm:$0xff]
    %v487 = vld [vmem:[#allocation5 + $0xdb8] sm:$0xff]
    %v488 = vld [vmem:[#allocation5 + $0xdc0] sm:$0xff]
    %v489 = vld [vmem:[#allocation5 + $0xdc8] sm:$0xff]
    %v490 = vld [vmem:[#allocation5 + $0xdd0] sm:$0xff]
    %v491 = vld [vmem:[#allocation5 + $0xdd8] sm:$0xff]
    %v492 = vld [vmem:[#allocation5 + $0xde0] sm:$0xff]
    %v493 = vld [vmem:[#allocation5 + $0xde8] sm:$0xff]
    %v494 = vld [vmem:[#allocation5 + $0xdf0] sm:$0xff]
    %v495 = vld [vmem:[#allocation5 + $0xdf8] sm:$0xff]
    %v496 = vld [vmem:[#allocation5 + $0xe00] sm:$0xff]
    %v497 = vld [vmem:[#allocation5 + $0xe08] sm:$0xff]
    %v498 = vld [vmem:[#allocation5 + $0xe10] sm:$0xff]
    %v499 = vld [vmem:[#allocation5 + $0xe18] sm:$0xff]
    %v500 = vld [vmem:[#allocation5 + $0xe20] sm:$0xff]
    %v501 = vld [vmem:[#allocation5 + $0xe28] sm:$0xff]
    %v502 = vld [vmem:[#allocation5 + $0xe30] sm:$0xff]
    %v503 = vld [vmem:[#allocation5 + $0xe38] sm:$0xff]
    %v504 = vld [vmem:[#allocation5 + $0xe40] sm:$0xff]
    %v505 = vld [vmem:[#allocation5 + $0xe48] sm:$0xff]
    %v506 = vld [vmem:[#allocation5 + $0xe50] sm:$0xff]
    %v507 = vld [vmem:[#allocation5 + $0xe58] sm:$0xff]
    %v508 = vld [vmem:[#allocation5 + $0xe60] sm:$0xff]
    %v509 = vld [vmem:[#allocation5 + $0xe68] sm:$0xff]
    %v510 = vld [vmem:[#allocation5 + $0xe70] sm:$0xff]
    %v511 = vld [vmem:[#allocation5 + $0xe78] sm:$0xff]
    %v512 = vld [vmem:[#allocation5 + $0xe80] sm:$0xff]
    %v513 = vld [vmem:[#allocation5 + $0xe88] sm:$0xff]
    %v514 = vld [vmem:[#allocation5 + $0xe90] sm:$0xff]
    %v515 = vld [vmem:[#allocation5 + $0xe98] sm:$0xff]
    %v516 = vld [vmem:[#allocation5 + $0xea0] sm:$0xff]
    %v517 = vld [vmem:[#allocation5 + $0xea8] sm:$0xff]
    %v518 = vld [vmem:[#allocation5 + $0xeb0] sm:$0xff]
    %v519 = vld [vmem:[#allocation5 + $0xeb8] sm:$0xff]
    %v520 = vld [vmem:[#allocation5 + $0xec0] sm:$0xff]
    %v521 = vld [vmem:[#allocation5 + $0xec8] sm:$0xff]
    %v522 = vld [vmem:[#allocation5 + $0xed0] sm:$0xff]
    %v523 = vld [vmem:[#allocation5 + $0xed8] sm:$0xff]
    %v524 = vld [vmem:[#allocation5 + $0xee0] sm:$0xff]
    %v525 = vld [vmem:[#allocation5 + $0xee8] sm:$0xff]
    %v526 = vld [vmem:[#allocation5 + $0xef0] sm:$0xff]
    %v527 = vld [vmem:[#allocation5 + $0xef8] sm:$0xff]
    %v528 = vld [vmem:[#allocation5 + $0xf00] sm:$0xff]
    %v529 = vld [vmem:[#allocation5 + $0xf08] sm:$0xff]
    %v530 = vld [vmem:[#allocation5 + $0xf10] sm:$0xff]
    %v531 = vld [vmem:[#allocation5 + $0xf18] sm:$0xff]
    %v532 = vld [vmem:[#allocation5 + $0xf20] sm:$0xff]
    %v533 = vld [vmem:[#allocation5 + $0xf28] sm:$0xff]
    %v534 = vld [vmem:[#allocation5 + $0xf30] sm:$0xff]
    %v535 = vld [vmem:[#allocation5 + $0xf38] sm:$0xff]
    %v536 = vld [vmem:[#allocation5 + $0xf40] sm:$0xff]
    %v537 = vld [vmem:[#allocation5 + $0xf48] sm:$0xff]
    %v538 = vld [vmem:[#allocation5 + $0xf50] sm:$0xff]
    %v539 = vld [vmem:[#allocation5 + $0xf58] sm:$0xff]
    %v540 = vld [vmem:[#allocation5 + $0xf60] sm:$0xff]
    %v541 = vld [vmem:[#allocation5 + $0xf68] sm:$0xff]
    %v542 = vld [vmem:[#allocation5 + $0xf70] sm:$0xff]
    %v543 = vld [vmem:[#allocation5 + $0xf78] sm:$0xff]
    %v544 = vld [vmem:[#allocation5 + $0xf80] sm:$0xff]
    %v545 = vld [vmem:[#allocation5 + $0xf88] sm:$0xff]
    %v546 = vld [vmem:[#allocation5 + $0xf90] sm:$0xff]
    %v547 = vld [vmem:[#allocation5 + $0xf98] sm:$0xff]
    %v548 = vld [vmem:[#allocation5 + $0xfa0] sm:$0xff]
    %v549 = vld [vmem:[#allocation5 + $0xfa8] sm:$0xff]
    %v550 = vld [vmem:[#allocation5 + $0xfb0] sm:$0xff]
    %v551 = vld [vmem:[#allocation5 + $0xfb8] sm:$0xff]
    %v552 = vld [vmem:[#allocation5 + $0xfc0] sm:$0xff]
    %v553 = vld [vmem:[#allocation5 + $0xfc8] sm:$0xff]
    %v554 = vld [vmem:[#allocation5 + $0xfd0] sm:$0xff]
    %v555 = vld [vmem:[#allocation5 + $0xfd8] sm:$0xff]
    %v556 = vld [vmem:[#allocation5 + $0xfe0] sm:$0xff]
    %v557 = vld [vmem:[#allocation5 + $0xfe8] sm:$0xff]
    %v558 = vld [vmem:[#allocation5 + $0xff0] sm:$0xff]
    %v559 = vld [vmem:[#allocation5 + $0xff8] sm:$0xff]
    %v560 = vld [vmem:[#allocation5 + $0x1000] sm:$0xff]
    %v561 = vld [vmem:[#allocation5 + $0x1008] sm:$0xff]
    %v562 = vld [vmem:[#allocation5 + $0x1010] sm:$0xff]
    %v563 = vld [vmem:[#allocation5 + $0x1018] sm:$0xff]
    %v564 = vld [vmem:[#allocation5 + $0x1020] sm:$0xff]
    %v565 = vld [vmem:[#allocation5 + $0x1028] sm:$0xff]
    %v566 = vld [vmem:[#allocation5 + $0x1030] sm:$0xff]
    %v567 = vld [vmem:[#allocation5 + $0x1038] sm:$0xff]
    %v568 = vld [vmem:[#allocation5 + $0x1040] sm:$0xff]
    %v569 = vld [vmem:[#allocation5 + $0x1048] sm:$0xff]
    %v570 = vld [vmem:[#allocation5 + $0x1050] sm:$0xff]
    %v571 = vld [vmem:[#allocation5 + $0x1058] sm:$0xff]
    %v572 = vld [vmem:[#allocation5 + $0x1060] sm:$0xff]
    %v573 = vld [vmem:[#allocation5 + $0x1068] sm:$0xff]
    %v574 = vld [vmem:[#allocation5 + $0x1070] sm:$0xff]
    %v575 = vld [vmem:[#allocation5 + $0x1078] sm:$0xff]
    %v576 = vld [vmem:[#allocation5 + $0x1080] sm:$0xff]
    %v577 = vld [vmem:[#allocation5 + $0x1088] sm:$0xff]
    %v578 = vld [vmem:[#allocation5 + $0x1090] sm:$0xff]
    %v579 = vld [vmem:[#allocation5 + $0x1098] sm:$0xff]
    %v580 = vld [vmem:[#allocation5 + $0x10a0] sm:$0xff]
    %v581 = vld [vmem:[#allocation5 + $0x10a8] sm:$0xff]
    %v582 = vld [vmem:[#allocation5 + $0x10b0] sm:$0xff]
    %v583 = vld [vmem:[#allocation5 + $0x10b8] sm:$0xff]
    %v584 = vld [vmem:[#allocation5 + $0x10c0] sm:$0xff]
    %v585 = vld [vmem:[#allocation5 + $0x10c8] sm:$0xff]
    %v586 = vld [vmem:[#allocation5 + $0x10d0] sm:$0xff]
    %v587 = vld [vmem:[#allocation5 + $0x10d8] sm:$0xff]
    %v588 = vld [vmem:[#allocation5 + $0x10e0] sm:$0xff]
    %v589 = vld [vmem:[#allocation5 + $0x10e8] sm:$0xff]
    %v590 = vld [vmem:[#allocation5 + $0x10f0] sm:$0xff]
    %v591 = vld [vmem:[#allocation5 + $0x10f8] sm:$0xff]
    %v592 = vld [vmem:[#allocation5 + $0x1100] sm:$0xff]
    %v593 = vld [vmem:[#allocation5 + $0x1108] sm:$0xff]
    %v594 = vld [vmem:[#allocation5 + $0x1110] sm:$0xff]
    %v595 = vld [vmem:[#allocation5 + $0x1118] sm:$0xff]
    %v596 = vld [vmem:[#allocation5 + $0x1120] sm:$0xff]
    %v597 = vld [vmem:[#allocation5 + $0x1128] sm:$0xff]
    %v598 = vld [vmem:[#allocation5 + $0x1130] sm:$0xff]
    %v599 = vld [vmem:[#allocation5 + $0x1138] sm:$0xff]
    %v600 = vld [vmem:[#allocation5 + $0x1140] sm:$0xff]
    %v601 = vld [vmem:[#allocation5 + $0x1148] sm:$0xff]
    %v602 = vld [vmem:[#allocation5 + $0x1150] sm:$0xff]
    %v603 = vld [vmem:[#allocation5 + $0x1158] sm:$0xff]
    %v604 = vld [vmem:[#allocation5 + $0x1160] sm:$0xff]
    %v605 = vld [vmem:[#allocation5 + $0x1168] sm:$0xff]
    %v606 = vld [vmem:[#allocation5 + $0x1170] sm:$0xff]
    %v607 = vld [vmem:[#allocation5 + $0x1178] sm:$0xff]
    %v608 = vld [vmem:[#allocation5 + $0x1180] sm:$0xff]
    %v609 = vld [vmem:[#allocation5 + $0x1188] sm:$0xff]
    %v610 = vld [vmem:[#allocation5 + $0x1190] sm:$0xff]
    %v611 = vld [vmem:[#allocation5 + $0x1198] sm:$0xff]
    %v612 = vld [vmem:[#allocation5 + $0x11a0] sm:$0xff]
    %v613 = vld [vmem:[#allocation5 + $0x11a8] sm:$0xff]
    %v614 = vld [vmem:[#allocation5 + $0x11b0] sm:$0xff]
    %v615 = vld [vmem:[#allocation5 + $0x11b8] sm:$0xff]
    %v616 = vld [vmem:[#allocation5 + $0x11c0] sm:$0xff]
    %v617 = vld [vmem:[#allocation5 + $0x11c8] sm:$0xff]
    %v618 = vld [vmem:[#allocation5 + $0x11d0] sm:$0xff]
    %v619 = vld [vmem:[#allocation5 + $0x11d8] sm:$0xff]
    %v620 = vld [vmem:[#allocation5 + $0x11e0] sm:$0xff]
    %v621 = vld [vmem:[#allocation5 + $0x11e8] sm:$0xff]
    %v622 = vld [vmem:[#allocation5 + $0x11f0] sm:$0xff]
    %v623 = vld [vmem:[#allocation5 + $0x11f8] sm:$0xff]
    %v624 = vld [vmem:[#allocation5 + $0x1200] sm:$0xff]
    %v625 = vld [vmem:[#allocation5 + $0x1208] sm:$0xff]
    %v626 = vld [vmem:[#allocation5 + $0x1210] sm:$0xff]
    %v627 = vld [vmem:[#allocation5 + $0x1218] sm:$0xff]
    %v628 = vld [vmem:[#allocation5 + $0x1220] sm:$0xff]
    %v629 = vld [vmem:[#allocation5 + $0x1228] sm:$0xff]
    %v630 = vld [vmem:[#allocation5 + $0x1230] sm:$0xff]
    %v631 = vld [vmem:[#allocation5 + $0x1238] sm:$0xff]
    %v632 = vld [vmem:[#allocation5 + $0x1240] sm:$0xff]
    %v633 = vld [vmem:[#allocation5 + $0x1248] sm:$0xff]
    %v634 = vld [vmem:[#allocation5 + $0x1250] sm:$0xff]
    %v635 = vld [vmem:[#allocation5 + $0x1258] sm:$0xff]
    %v636 = vld [vmem:[#allocation5 + $0x1260] sm:$0xff]
    %v637 = vld [vmem:[#allocation5 + $0x1268] sm:$0xff]
    %v638 = vld [vmem:[#allocation5 + $0x1270] sm:$0xff]
    %v639 = vld [vmem:[#allocation5 + $0x1278] sm:$0xff]
    %v640 = vld [vmem:[#allocation5 + $0x1280] sm:$0xff]
    %v641 = vld [vmem:[#allocation5 + $0x1288] sm:$0xff]
    %v642 = vld [vmem:[#allocation5 + $0x1290] sm:$0xff]
    %v643 = vld [vmem:[#allocation5 + $0x1298] sm:$0xff]
    %v644 = vld [vmem:[#allocation5 + $0x12a0] sm:$0xff]
    %v645 = vld [vmem:[#allocation5 + $0x12a8] sm:$0xff]
    %v646 = vld [vmem:[#allocation5 + $0x12b0] sm:$0xff]
    %v647 = vld [vmem:[#allocation5 + $0x12b8] sm:$0xff]
    %v648 = vld [vmem:[#allocation5 + $0x12c0] sm:$0xff]
    %v649 = vld [vmem:[#allocation5 + $0x12c8] sm:$0xff]
    %v650 = vld [vmem:[#allocation5 + $0x12d0] sm:$0xff]
    %v651 = vld [vmem:[#allocation5 + $0x12d8] sm:$0xff]
    %v652 = vld [vmem:[#allocation5 + $0x12e0] sm:$0xff]
    %v653 = vld [vmem:[#allocation5 + $0x12e8] sm:$0xff]
    %v654 = vld [vmem:[#allocation5 + $0x12f0] sm:$0xff]
    %v655 = vld [vmem:[#allocation5 + $0x12f8] sm:$0xff]
    %v656 = vld [vmem:[#allocation5 + $0x1300] sm:$0xff]
    %v657 = vld [vmem:[#allocation5 + $0x1308] sm:$0xff]
    %v658 = vld [vmem:[#allocation5 + $0x1310] sm:$0xff]
    %v659 = vld [vmem:[#allocation5 + $0x1318] sm:$0xff]
    %v660 = vld [vmem:[#allocation5 + $0x1320] sm:$0xff]
    %v661 = vld [vmem:[#allocation5 + $0x1328] sm:$0xff]
    %v662 = vld [vmem:[#allocation5 + $0x1330] sm:$0xff]
    %v663 = vld [vmem:[#allocation5 + $0x1338] sm:$0xff]
    %v664 = vld [vmem:[#allocation5 + $0x1340] sm:$0xff]
    %v665 = vld [vmem:[#allocation5 + $0x1348] sm:$0xff]
    %v666 = vld [vmem:[#allocation5 + $0x1350] sm:$0xff]
    %v667 = vld [vmem:[#allocation5 + $0x1358] sm:$0xff]
    %v668 = vld [vmem:[#allocation5 + $0x1360] sm:$0xff]
    %v669 = vld [vmem:[#allocation5 + $0x1368] sm:$0xff]
    %v670 = vld [vmem:[#allocation5 + $0x1370] sm:$0xff]
    %v671 = vld [vmem:[#allocation5 + $0x1378] sm:$0xff]
    %v672 = vld [vmem:[#allocation5 + $0x1380] sm:$0xff]
    %v673 = vld [vmem:[#allocation5 + $0x1388] sm:$0xff]
    %v674 = vld [vmem:[#allocation5 + $0x1390] sm:$0xff]
    %v675 = vld [vmem:[#allocation5 + $0x1398] sm:$0xff]
    %v676 = vld [vmem:[#allocation5 + $0x13a0] sm:$0xff]
    %v677 = vld [vmem:[#allocation5 + $0x13a8] sm:$0xff]
    %v678 = vld [vmem:[#allocation5 + $0x13b0] sm:$0xff]
    %v679 = vld [vmem:[#allocation5 + $0x13b8] sm:$0xff]
    %v680 = vld [vmem:[#allocation5 + $0x13c0] sm:$0xff]
    %v681 = vld [vmem:[#allocation5 + $0x13c8] sm:$0xff]
    %v682 = vld [vmem:[#allocation5 + $0x13d0] sm:$0xff]
    %v683 = vld [vmem:[#allocation5 + $0x13d8] sm:$0xff]
    %v684 = vld [vmem:[#allocation5 + $0x13e0] sm:$0xff]
    %v685 = vld [vmem:[#allocation5 + $0x13e8] sm:$0xff]
    %v686 = vld [vmem:[#allocation5 + $0x13f0] sm:$0xff]
    %v687 = vld [vmem:[#allocation5 + $0x13f8] sm:$0xff]
    %v688 = vld [vmem:[#allocation5 + $0x1400] sm:$0xff]
    %v689 = vld [vmem:[#allocation5 + $0x1408] sm:$0xff]
    %v690 = vld [vmem:[#allocation5 + $0x1410] sm:$0xff]
    %v691 = vld [vmem:[#allocation5 + $0x1418] sm:$0xff]
    %v692 = vld [vmem:[#allocation5 + $0x1420] sm:$0xff]
    %v693 = vld [vmem:[#allocation5 + $0x1428] sm:$0xff]
    %v694 = vld [vmem:[#allocation5 + $0x1430] sm:$0xff]
    %v695 = vld [vmem:[#allocation5 + $0x1438] sm:$0xff]
    %v696 = vld [vmem:[#allocation5 + $0x1440] sm:$0xff]
    %v697 = vld [vmem:[#allocation5 + $0x1448] sm:$0xff]
    %v698 = vld [vmem:[#allocation5 + $0x1450] sm:$0xff]
    %v699 = vld [vmem:[#allocation5 + $0x1458] sm:$0xff]
    %v700 = vld [vmem:[#allocation5 + $0x1460] sm:$0xff]
    %v701 = vld [vmem:[#allocation5 + $0x1468] sm:$0xff]
    %v702 = vld [vmem:[#allocation5 + $0x1470] sm:$0xff]
    %v703 = vld [vmem:[#allocation5 + $0x1478] sm:$0xff]
    %v704 = vld [vmem:[#allocation5 + $0x1480] sm:$0xff]
    %v705 = vld [vmem:[#allocation5 + $0x1488] sm:$0xff]
    %v706 = vld [vmem:[#allocation5 + $0x1490] sm:$0xff]
    %v707 = vld [vmem:[#allocation5 + $0x1498] sm:$0xff]
    %v708 = vld [vmem:[#allocation5 + $0x14a0] sm:$0xff]
    %v709 = vld [vmem:[#allocation5 + $0x14a8] sm:$0xff]
    %v710 = vld [vmem:[#allocation5 + $0x14b0] sm:$0xff]
    %v711 = vld [vmem:[#allocation5 + $0x14b8] sm:$0xff]
    %v712 = vld [vmem:[#allocation5 + $0x14c0] sm:$0xff]
    %v713 = vld [vmem:[#allocation5 + $0x14c8] sm:$0xff]
    %v714 = vld [vmem:[#allocation5 + $0x14d0] sm:$0xff]
    %v715 = vld [vmem:[#allocation5 + $0x14d8] sm:$0xff]
    %v716 = vld [vmem:[#allocation5 + $0x14e0] sm:$0xff]
    %v717 = vld [vmem:[#allocation5 + $0x14e8] sm:$0xff]
    %v718 = vld [vmem:[#allocation5 + $0x14f0] sm:$0xff]
    %v719 = vld [vmem:[#allocation5 + $0x14f8] sm:$0xff]
    %v720 = vld [vmem:[#allocation5 + $0x1500] sm:$0xff]
    %v721 = vld [vmem:[#allocation5 + $0x1508] sm:$0xff]
    %v722 = vld [vmem:[#allocation5 + $0x1510] sm:$0xff]
    %v723 = vld [vmem:[#allocation5 + $0x1518] sm:$0xff]
    %v724 = vld [vmem:[#allocation5 + $0x1520] sm:$0xff]
    %v725 = vld [vmem:[#allocation5 + $0x1528] sm:$0xff]
    %v726 = vld [vmem:[#allocation5 + $0x1530] sm:$0xff]
    %v727 = vld [vmem:[#allocation5 + $0x1538] sm:$0xff]
    %v728 = vld [vmem:[#allocation5 + $0x1540] sm:$0xff]
    %v729 = vld [vmem:[#allocation5 + $0x1548] sm:$0xff]
    %v730 = vld [vmem:[#allocation5 + $0x1550] sm:$0xff]
    %v731 = vld [vmem:[#allocation5 + $0x1558] sm:$0xff]
    %v732 = vld [vmem:[#allocation5 + $0x1560] sm:$0xff]
    %v733 = vld [vmem:[#allocation5 + $0x1568] sm:$0xff]
    %vm734 = vcmask 130048
    %v736 = vsel %vm734, %v47, 0
    %738 = vmatprep.subr.mxu0 %v49
    %739 = vmatpush1.msra.mxu0 %v48
    %740 = vmatprep.subr.mxu0 %v56
    %741 = vmatpush1.msra.mxu0 %v55
    %742 = vmatprep.subr.mxu0 %v63
    %743 = vmatpush1.msra.mxu0 %v62
    %744 = vmatprep.subr.mxu0 %v70
    %745 = vmatpush1.msra.mxu0 %v69
    %746 = vmatprep.subr.mxu0 %v77
    %747 = vmatpush1.msra.mxu0 %v76
    %748 = vmatprep.subr.mxu0 %v84
    %749 = vmatpush1.msra.mxu0 %v83
    %750 = vmatprep.subr.mxu0 %v91
    %751 = vmatpush1.msra.mxu0 %v90
    %752 = vmatprep.subr.mxu0 %v98
    %753 = vmatpush1.msra.mxu0 %v97
    %754 = vmatprep.subr.mxu0 %v105
    %755 = vmatpush1.msra.mxu0 %v104
    %756 = vmatprep.subr.mxu0 %v112
    %757 = vmatpush1.msra.mxu0 %v111
    %758 = vmatprep.subr.mxu0 %v119
    %759 = vmatpush1.msra.mxu0 %v118
    %760 = vmatprep.subr.mxu0 %v126
    %761 = vmatpush1.msra.mxu0 %v125
    %762 = vmatprep.subr.mxu0 %v133
    %763 = vmatpush1.msra.mxu0 %v132
    %764 = vmatprep.subr.mxu0 %v140
    %765 = vmatpush1.msra.mxu0 %v139
    %766 = vmatprep.subr.mxu0 %v147
    %767 = vmatpush1.msra.mxu0 %v146
    %768 = vmatprep.subr.mxu0 %v154
    %769 = vmatpush1.msra.mxu0 %v153
    %770 = vmatprep.subr.mxu0 %v161
    %771 = vmatpush1.msra.mxu0 %v160
    %772 = vmatprep.subr.mxu0 %v168
    %773 = vmatpush1.msra.mxu0 %v167
    %774 = vmatprep.subr.mxu0 %v175
    %775 = vmatpush1.msra.mxu0 %v174
    %776 = vmatprep.subr.mxu0 %v182
    %777 = vmatpush1.msra.mxu0 %v181
    %778 = vmatprep.subr.mxu0 %v189
    %779 = vmatpush1.msra.mxu0 %v188
    %780 = vmatprep.subr.mxu0 %v196
    %781 = vmatpush1.msra.mxu0 %v195
    %782 = vmatprep.subr.mxu0 %v203
    %783 = vmatpush1.msra.mxu0 %v202
    %784 = vmatprep.subr.mxu0 %v210
    %785 = vmatpush1.msra.mxu0 %v209
    %786 = vmatprep.subr.mxu0 %v217
    %787 = vmatpush1.msra.mxu0 %v216
    %788 = vmatprep.subr.mxu0 %v224
    %789 = vmatpush1.msra.mxu0 %v223
    %790 = vmatprep.subr.mxu0 %v231
    %791 = vmatpush1.msra.mxu0 %v230
    %792 = vmatprep.subr.mxu0 %v238
    %793 = vmatpush1.msra.mxu0 %v237
    %794 = vmatprep.subr.mxu0 %v245
    %795 = vmatpush1.msra.mxu0 %v244
    %796 = vmatprep.subr.mxu0 %v252
    %797 = vmatpush1.msra.mxu0 %v251
    %798 = vmatprep.subr.mxu0 %v259
    %799 = vmatpush1.msra.mxu0 %v258
    %800 = vmatprep.subr.mxu0 %v266
    %801 = vmatpush1.msra.mxu0 %v265
    %802 = vmatprep.mubr.f32.mxu0 %v42
    %803 = vmatmul.mubr.f32.gmra.mrb[0].mxu0 %v41
    %v804 = vpop.f32.mrb[0].mxu0
    %v805 = vadd.f32 0.0, %v804
    %v806 = vpop.f32.mrb[0].mxu0
    %v807 = vadd.f32 0.0, %v806
    %808 = vdwg.mxu0
    %809 = vmatprep.subr.mxu0 %v273
    %810 = vmatpush1.msra.mxu0 %v272
    %811 = vmatprep.subr.mxu0 %v280
    %812 = vmatpush1.msra.mxu0 %v279
    %813 = vmatprep.subr.mxu0 %v287
    %814 = vmatpush1.msra.mxu0 %v286
    %815 = vmatprep.subr.mxu0 %v294
    %816 = vmatpush1.msra.mxu0 %v293
    %817 = vmatprep.subr.mxu0 %v301
    %818 = vmatpush1.msra.mxu0 %v300
    %819 = vmatprep.subr.mxu0 %v308
    %820 = vmatpush1.msra.mxu0 %v307
    %821 = vmatprep.subr.mxu0 %v315
    %822 = vmatpush1.msra.mxu0 %v314
    %823 = vmatprep.subr.mxu0 %v322
    %824 = vmatpush1.msra.mxu0 %v321
    %825 = vmatprep.subr.mxu0 %v329
    %826 = vmatpush1.msra.mxu0 %v328
    %827 = vmatprep.subr.mxu0 %v336
    %828 = vmatpush1.msra.mxu0 %v335
    %829 = vmatprep.subr.mxu0 %v343
    %830 = vmatpush1.msra.mxu0 %v342
    %831 = vmatprep.subr.mxu0 %v350
    %832 = vmatpush1.msra.mxu0 %v349
    %833 = vmatprep.subr.mxu0 %v357
    %834 = vmatpush1.msra.mxu0 %v356
    %835 = vmatprep.subr.mxu0 %v364
    %836 = vmatpush1.msra.mxu0 %v363
    %837 = vmatprep.subr.mxu0 %v371
    %838 = vmatpush1.msra.mxu0 %v370
    %839 = vmatprep.subr.mxu0 %v378
    %840 = vmatpush1.msra.mxu0 %v377
    %841 = vmatprep.subr.mxu0 %v385
    %842 = vmatpush1.msra.mxu0 %v384
    %843 = vmatprep.subr.mxu0 %v392
    %844 = vmatpush1.msra.mxu0 %v391
    %845 = vmatprep.subr.mxu0 %v399
    %846 = vmatpush1.msra.mxu0 %v398
    %847 = vmatprep.subr.mxu0 %v406
    %848 = vmatpush1.msra.mxu0 %v405
    %849 = vmatprep.subr.mxu0 %v413
    %850 = vmatpush1.msra.mxu0 %v412
    %851 = vmatprep.subr.mxu0 %v420
    %852 = vmatpush1.msra.mxu0 %v419
    %853 = vmatprep.subr.mxu0 %v427
    %854 = vmatpush1.msra.mxu0 %v426
    %855 = vmatprep.subr.mxu0 %v434
    %856 = vmatpush1.msra.mxu0 %v433
    %857 = vmatprep.subr.mxu0 %v441
    %858 = vmatpush1.msra.mxu0 %v440
    %859 = vmatprep.subr.mxu0 %v448
    %860 = vmatpush1.msra.mxu0 %v447
    %861 = vmatprep.subr.mxu0 %v455
    %862 = vmatpush1.msra.mxu0 %v454
    %863 = vmatprep.subr.mxu0 %v462
    %864 = vmatpush1.msra.mxu0 %v461
    %865 = vmatprep.subr.mxu0 %v469
    %866 = vmatpush1.msra.mxu0 %v468
    %867 = vmatprep.subr.mxu0 %v476
    %868 = vmatpush1.msra.mxu0 %v475
    %869 = vmatprep.subr.mxu0 %v483
    %870 = vmatpush1.msra.mxu0 %v482
    %871 = vmatprep.subr.mxu0 %v490
    %872 = vmatpush1.msra.mxu0 %v489
    %873 = vmatprep.mubr.f32.mxu0 %v44
    %874 = vmatmul.mubr.f32.gmra.mrb[0].mxu0 %v43
    %v875 = vpop.f32.mrb[0].mxu0
    %v876 = vadd.f32 %v805, %v875
    %v877 = vpop.f32.mrb[0].mxu0
    %v878 = vadd.f32 %v807, %v877
    %879 = vdwg.mxu0
    %880 = vmatprep.subr.mxu0 %v497
    %881 = vmatpush1.msra.mxu0 %v496
    %882 = vmatprep.subr.mxu0 %v504
    %883 = vmatpush1.msra.mxu0 %v503
    %884 = vmatprep.subr.mxu0 %v511
    %885 = vmatpush1.msra.mxu0 %v510
    %886 = vmatprep.subr.mxu0 %v518
    %887 = vmatpush1.msra.mxu0 %v517
    %888 = vmatprep.subr.mxu0 %v525
    %889 = vmatpush1.msra.mxu0 %v524
    %890 = vmatprep.subr.mxu0 %v532
    %891 = vmatpush1.msra.mxu0 %v531
    %892 = vmatprep.subr.mxu0 %v539
    %893 = vmatpush1.msra.mxu0 %v538
    %894 = vmatprep.subr.mxu0 %v546
    %895 = vmatpush1.msra.mxu0 %v545
    %896 = vmatprep.subr.mxu0 %v553
    %897 = vmatpush1.msra.mxu0 %v552
    %898 = vmatprep.subr.mxu0 %v560
    %899 = vmatpush1.msra.mxu0 %v559
    %900 = vmatprep.subr.mxu0 %v567
    %901 = vmatpush1.msra.mxu0 %v566
    %902 = vmatprep.subr.mxu0 %v574
    %903 = vmatpush1.msra.mxu0 %v573
    %904 = vmatprep.subr.mxu0 %v581
    %905 = vmatpush1.msra.mxu0 %v580
    %906 = vmatprep.subr.mxu0 %v588
    %907 = vmatpush1.msra.mxu0 %v587
    %908 = vmatprep.subr.mxu0 %v595
    %909 = vmatpush1.msra.mxu0 %v594
    %910 = vmatprep.subr.mxu0 %v602
    %911 = vmatpush1.msra.mxu0 %v601
    %912 = vmatprep.subr.mxu0 %v609
    %913 = vmatpush1.msra.mxu0 %v608
    %914 = vmatprep.subr.mxu0 %v616
    %915 = vmatpush1.msra.mxu0 %v615
    %916 = vmatprep.subr.mxu0 %v623
    %917 = vmatpush1.msra.mxu0 %v622
    %918 = vmatprep.subr.mxu0 %v630
    %919 = vmatpush1.msra.mxu0 %v629
    %920 = vmatprep.subr.mxu0 %v637
    %921 = vmatpush1.msra.mxu0 %v636
    %922 = vmatprep.subr.mxu0 %v644
    %923 = vmatpush1.msra.mxu0 %v643
    %924 = vmatprep.subr.mxu0 %v651
    %925 = vmatpush1.msra.mxu0 %v650
    %926 = vmatprep.subr.mxu0 %v658
    %927 = vmatpush1.msra.mxu0 %v657
    %928 = vmatprep.subr.mxu0 %v665
    %929 = vmatpush1.msra.mxu0 %v664
    %930 = vmatprep.subr.mxu0 %v672
    %931 = vmatpush1.msra.mxu0 %v671
    %932 = vmatprep.subr.mxu0 %v679
    %933 = vmatpush1.msra.mxu0 %v678
    %934 = vmatprep.subr.mxu0 %v686
    %935 = vmatpush1.msra.mxu0 %v685
    %936 = vmatprep.subr.mxu0 %v693
    %937 = vmatpush1.msra.mxu0 %v692
    %938 = vmatprep.subr.mxu0 %v700
    %939 = vmatpush1.msra.mxu0 %v699
    %940 = vmatprep.subr.mxu0 %v707
    %941 = vmatpush1.msra.mxu0 %v706
    %942 = vmatprep.subr.mxu0 %v714
    %943 = vmatpush1.msra.mxu0 %v713
    %944 = vmatprep.mubr.f32.mxu0 %v46
    %945 = vmatmul.mubr.f32.gmra.mrb[0].mxu0 %v45
    %v946 = vpop.f32.mrb[0].mxu0
    %v947 = vadd.f32 %v876, %v946
    %v948 = vpop.f32.mrb[0].mxu0
    %v949 = vadd.f32 %v878, %v948
    %950 = vdwg.mxu0
    %951 = vmatprep.subr.mxu0 %v721
    %952 = vmatpush1.msra.mxu0 %v720
    %953 = vmatprep.subr.mxu0 %v728
    %954 = vmatpush1.msra.mxu0 %v727
    %955 = vmatprep.subr.mxu0 0.0
    %956 = vmatpush1.msra.mxu0 0.0
    %957 = vmatprep.subr.mxu0 0.0
    %958 = vmatpush1.msra.mxu0 0.0
    %959 = vmatprep.subr.mxu0 0.0
    %960 = vmatpush1.msra.mxu0 0.0
    %961 = vmatprep.subr.mxu0 0.0
    %962 = vmatpush1.msra.mxu0 0.0
    %963 = vmatprep.subr.mxu0 0.0
    %964 = vmatpush1.msra.mxu0 0.0
    %965 = vmatprep.subr.mxu0 0.0
    %966 = vmatpush1.msra.mxu0 0.0
    %967 = vmatprep.subr.mxu0 0.0
    %968 = vmatpush1.msra.mxu0 0.0
    %969 = vmatprep.subr.mxu0 0.0
    %970 = vmatpush1.msra.mxu0 0.0
    %971 = vmatprep.subr.mxu0 0.0
    %972 = vmatpush1.msra.mxu0 0.0
    %973 = vmatprep.subr.mxu0 0.0
    %974 = vmatpush1.msra.mxu0 0.0
    %975 = vmatprep.subr.mxu0 0.0
    %976 = vmatpush1.msra.mxu0 0.0
    %977 = vmatprep.subr.mxu0 0.0
    %978 = vmatpush1.msra.mxu0 0.0
    %979 = vmatprep.subr.mxu0 0.0
    %980 = vmatpush1.msra.mxu0 0.0
    %981 = vmatprep.subr.mxu0 0.0
    %982 = vmatpush1.msra.mxu0 0.0
    %983 = vmatprep.subr.mxu0 0.0
    %984 = vmatpush1.msra.mxu0 0.0
    %985 = vmatprep.subr.mxu0 0.0
    %986 = vmatpush1.msra.mxu0 0.0
    %987 = vmatprep.subr.mxu0 0.0
    %988 = vmatpush1.msra.mxu0 0.0
    %989 = vmatprep.subr.mxu0 0.0
    %990 = vmatpush1.msra.mxu0 0.0
    %991 = vmatprep.subr.mxu0 0.0
    %992 = vmatpush1.msra.mxu0 0.0
    %993 = vmatprep.subr.mxu0 0.0
    %994 = vmatpush1.msra.mxu0 0.0
    %995 = vmatprep.subr.mxu0 0.0
    %996 = vmatpush1.msra.mxu0 0.0
    %997 = vmatprep.subr.mxu0 0.0
    %998 = vmatpush1.msra.mxu0 0.0
    %999 = vmatprep.subr.mxu0 0.0
    %1000 = vmatpush1.msra.mxu0 0.0
    %1001 = vmatprep.subr.mxu0 0.0
    %1002 = vmatpush1.msra.mxu0 0.0
    %1003 = vmatprep.subr.mxu0 0.0
    %1004 = vmatpush1.msra.mxu0 0.0
    %1005 = vmatprep.subr.mxu0 0.0
    %1006 = vmatpush1.msra.mxu0 0.0
    %1007 = vmatprep.subr.mxu0 0.0
    %1008 = vmatpush1.msra.mxu0 0.0
    %1009 = vmatprep.subr.mxu0 0.0
    %1010 = vmatpush1.msra.mxu0 0.0
    %1011 = vmatprep.subr.mxu0 0.0
    %1012 = vmatpush1.msra.mxu0 0.0
    %1013 = vmatprep.subr.mxu0 0.0
    %1014 = vmatpush1.msra.mxu0 0.0
    %1015 = vmatprep.mubr.f32.mxu0 0.0
    %1016 = vmatmul.mubr.f32.gmra.mrb[0].mxu0 %v736
    %v1017 = vpop.f32.mrb[0].mxu0
    %v1018 = vadd.f32 %v947, %v1017
    %v1019 = vpop.f32.mrb[0].mxu0
    %v1020 = vadd.f32 %v949, %v1019
    %1021 = vdwg.mxu0
    %1022 = vmatprep.subr.mxu0 %v51
    %1023 = vmatpush1.msra.mxu0 %v50
    %1024 = vmatprep.subr.mxu0 %v58
    %1025 = vmatpush1.msra.mxu0 %v57
    %1026 = vmatprep.subr.mxu0 %v65
    %1027 = vmatpush1.msra.mxu0 %v64
    %1028 = vmatprep.subr.mxu0 %v72
    %1029 = vmatpush1.msra.mxu0 %v71
    %1030 = vmatprep.subr.mxu0 %v79
    %1031 = vmatpush1.msra.mxu0 %v78
    %1032 = vmatprep.subr.mxu0 %v86
    %1033 = vmatpush1.msra.mxu0 %v85
    %1034 = vmatprep.subr.mxu0 %v93
    %1035 = vmatpush1.msra.mxu0 %v92
    %1036 = vmatprep.subr.mxu0 %v100
    %1037 = vmatpush1.msra.mxu0 %v99
    %1038 = vmatprep.subr.mxu0 %v107
    %1039 = vmatpush1.msra.mxu0 %v106
    %1040 = vmatprep.subr.mxu0 %v114
    %1041 = vmatpush1.msra.mxu0 %v113
    %1042 = vmatprep.subr.mxu0 %v121
    %1043 = vmatpush1.msra.mxu0 %v120
    %1044 = vmatprep.subr.mxu0 %v128
    %1045 = vmatpush1.msra.mxu0 %v127
    %1046 = vmatprep.subr.mxu0 %v135
    %1047 = vmatpush1.msra.mxu0 %v134
    %1048 = vmatprep.subr.mxu0 %v142
    %1049 = vmatpush1.msra.mxu0 %v141
    %1050 = vmatprep.subr.mxu0 %v149
    %1051 = vmatpush1.msra.mxu0 %v148
    %1052 = vmatprep.subr.mxu0 %v156
    %1053 = vmatpush1.msra.mxu0 %v155
    %1054 = vmatprep.subr.mxu0 %v163
    %1055 = vmatpush1.msra.mxu0 %v162
    %1056 = vmatprep.subr.mxu0 %v170
    %1057 = vmatpush1.msra.mxu0 %v169
    %1058 = vmatprep.subr.mxu0 %v177
    %1059 = vmatpush1.msra.mxu0 %v176
    %1060 = vmatprep.subr.mxu0 %v184
    %1061 = vmatpush1.msra.mxu0 %v183
    %1062 = vmatprep.subr.mxu0 %v191
    %1063 = vmatpush1.msra.mxu0 %v190
    %1064 = vmatprep.subr.mxu0 %v198
    %1065 = vmatpush1.msra.mxu0 %v197
    %1066 = vmatprep.subr.mxu0 %v205
    %1067 = vmatpush1.msra.mxu0 %v204
    %1068 = vmatprep.subr.mxu0 %v212
    %1069 = vmatpush1.msra.mxu0 %v211
    %1070 = vmatprep.subr.mxu0 %v219
    %1071 = vmatpush1.msra.mxu0 %v218
    %1072 = vmatprep.subr.mxu0 %v226
    %1073 = vmatpush1.msra.mxu0 %v225
    %1074 = vmatprep.subr.mxu0 %v233
    %1075 = vmatpush1.msra.mxu0 %v232
    %1076 = vmatprep.subr.mxu0 %v240
    %1077 = vmatpush1.msra.mxu0 %v239
    %1078 = vmatprep.subr.mxu0 %v247
    %1079 = vmatpush1.msra.mxu0 %v246
    %1080 = vmatprep.subr.mxu0 %v254
    %1081 = vmatpush1.msra.mxu0 %v253
    %1082 = vmatprep.subr.mxu0 %v261
    %1083 = vmatpush1.msra.mxu0 %v260
    %1084 = vmatprep.subr.mxu0 %v268
    %1085 = vmatpush1.msra.mxu0 %v267
    %1086 = vmatprep.mubr.f32.mxu0 %v42
    %1087 = vmatmul.mubr.f32.gmra.mrb[0].mxu0 %v41
    %v1088 = vpop.f32.mrb[0].mxu0
    %v1089 = vadd.f32 0.0, %v1088
    %v1090 = vpop.f32.mrb[0].mxu0
    %v1091 = vadd.f32 0.0, %v1090
    %1092 = vdwg.mxu0
    %1093 = vmatprep.subr.mxu0 %v275
    %1094 = vmatpush1.msra.mxu0 %v274
    %1095 = vmatprep.subr.mxu0 %v282
    %1096 = vmatpush1.msra.mxu0 %v281
    %1097 = vmatprep.subr.mxu0 %v289
    %1098 = vmatpush1.msra.mxu0 %v288
    %1099 = vmatprep.subr.mxu0 %v296
    %1100 = vmatpush1.msra.mxu0 %v295
    %1101 = vmatprep.subr.mxu0 %v303
    %1102 = vmatpush1.msra.mxu0 %v302
    %1103 = vmatprep.subr.mxu0 %v310
    %1104 = vmatpush1.msra.mxu0 %v309
    %1105 = vmatprep.subr.mxu0 %v317
    %1106 = vmatpush1.msra.mxu0 %v316
    %1107 = vmatprep.subr.mxu0 %v324
    %1108 = vmatpush1.msra.mxu0 %v323
    %1109 = vmatprep.subr.mxu0 %v331
    %1110 = vmatpush1.msra.mxu0 %v330
    %1111 = vmatprep.subr.mxu0 %v338
    %1112 = vmatpush1.msra.mxu0 %v337
    %1113 = vmatprep.subr.mxu0 %v345
    %1114 = vmatpush1.msra.mxu0 %v344
    %1115 = vmatprep.subr.mxu0 %v352
    %1116 = vmatpush1.msra.mxu0 %v351
    %1117 = vmatprep.subr.mxu0 %v359
    %1118 = vmatpush1.msra.mxu0 %v358
    %1119 = vmatprep.subr.mxu0 %v366
    %1120 = vmatpush1.msra.mxu0 %v365
    %1121 = vmatprep.subr.mxu0 %v373
    %1122 = vmatpush1.msra.mxu0 %v372
    %1123 = vmatprep.subr.mxu0 %v380
    %1124 = vmatpush1.msra.mxu0 %v379
    %1125 = vmatprep.subr.mxu0 %v387
    %1126 = vmatpush1.msra.mxu0 %v386
    %1127 = vmatprep.subr.mxu0 %v394
    %1128 = vmatpush1.msra.mxu0 %v393
    %1129 = vmatprep.subr.mxu0 %v401
    %1130 = vmatpush1.msra.mxu0 %v400
    %1131 = vmatprep.subr.mxu0 %v408
    %1132 = vmatpush1.msra.mxu0 %v407
    %1133 = vmatprep.subr.mxu0 %v415
    %1134 = vmatpush1.msra.mxu0 %v414
    %1135 = vmatprep.subr.mxu0 %v422
    %1136 = vmatpush1.msra.mxu0 %v421
    %1137 = vmatprep.subr.mxu0 %v429
    %1138 = vmatpush1.msra.mxu0 %v428
    %1139 = vmatprep.subr.mxu0 %v436
    %1140 = vmatpush1.msra.mxu0 %v435
    %1141 = vmatprep.subr.mxu0 %v443
    %1142 = vmatpush1.msra.mxu0 %v442
    %1143 = vmatprep.subr.mxu0 %v450
    %1144 = vmatpush1.msra.mxu0 %v449
    %1145 = vmatprep.subr.mxu0 %v457
    %1146 = vmatpush1.msra.mxu0 %v456
    %1147 = vmatprep.subr.mxu0 %v464
    %1148 = vmatpush1.msra.mxu0 %v463
    %1149 = vmatprep.subr.mxu0 %v471
    %1150 = vmatpush1.msra.mxu0 %v470
    %1151 = vmatprep.subr.mxu0 %v478
    %1152 = vmatpush1.msra.mxu0 %v477
    %1153 = vmatprep.subr.mxu0 %v485
    %1154 = vmatpush1.msra.mxu0 %v484
    %1155 = vmatprep.subr.mxu0 %v492
    %1156 = vmatpush1.msra.mxu0 %v491
    %1157 = vmatprep.mubr.f32.mxu0 %v44
    %1158 = vmatmul.mubr.f32.gmra.mrb[0].mxu0 %v43
    %v1159 = vpop.f32.mrb[0].mxu0
    %v1160 = vadd.f32 %v1089, %v1159
    %v1161 = vpop.f32.mrb[0].mxu0
    %v1162 = vadd.f32 %v1091, %v1161
    %1163 = vdwg.mxu0
    %1164 = vmatprep.subr.mxu0 %v499
    %1165 = vmatpush1.msra.mxu0 %v498
    %1166 = vmatprep.subr.mxu0 %v506
    %1167 = vmatpush1.msra.mxu0 %v505
    %1168 = vmatprep.subr.mxu0 %v513
    %1169 = vmatpush1.msra.mxu0 %v512
    %1170 = vmatprep.subr.mxu0 %v520
    %1171 = vmatpush1.msra.mxu0 %v519
    %1172 = vmatprep.subr.mxu0 %v527
    %1173 = vmatpush1.msra.mxu0 %v526
    %1174 = vmatprep.subr.mxu0 %v534
    %1175 = vmatpush1.msra.mxu0 %v533
    %1176 = vmatprep.subr.mxu0 %v541
    %1177 = vmatpush1.msra.mxu0 %v540
    %1178 = vmatprep.subr.mxu0 %v548
    %1179 = vmatpush1.msra.mxu0 %v547
    %1180 = vmatprep.subr.mxu0 %v555
    %1181 = vmatpush1.msra.mxu0 %v554
    %1182 = vmatprep.subr.mxu0 %v562
    %1183 = vmatpush1.msra.mxu0 %v561
    %1184 = vmatprep.subr.mxu0 %v569
    %1185 = vmatpush1.msra.mxu0 %v568
    %1186 = vmatprep.subr.mxu0 %v576
    %1187 = vmatpush1.msra.mxu0 %v575
    %1188 = vmatprep.subr.mxu0 %v583
    %1189 = vmatpush1.msra.mxu0 %v582
    %1190 = vmatprep.subr.mxu0 %v590
    %1191 = vmatpush1.msra.mxu0 %v589
    %1192 = vmatprep.subr.mxu0 %v597
    %1193 = vmatpush1.msra.mxu0 %v596
    %1194 = vmatprep.subr.mxu0 %v604
    %1195 = vmatpush1.msra.mxu0 %v603
    %1196 = vmatprep.subr.mxu0 %v611
    %1197 = vmatpush1.msra.mxu0 %v610
    %1198 = vmatprep.subr.mxu0 %v618
    %1199 = vmatpush1.msra.mxu0 %v617
    %1200 = vmatprep.subr.mxu0 %v625
    %1201 = vmatpush1.msra.mxu0 %v624
    %1202 = vmatprep.subr.mxu0 %v632
    %1203 = vmatpush1.msra.mxu0 %v631
    %1204 = vmatprep.subr.mxu0 %v639
    %1205 = vmatpush1.msra.mxu0 %v638
    %1206 = vmatprep.subr.mxu0 %v646
    %1207 = vmatpush1.msra.mxu0 %v645
    %1208 = vmatprep.subr.mxu0 %v653
    %1209 = vmatpush1.msra.mxu0 %v652
    %1210 = vmatprep.subr.mxu0 %v660
    %1211 = vmatpush1.msra.mxu0 %v659
    %1212 = vmatprep.subr.mxu0 %v667
    %1213 = vmatpush1.msra.mxu0 %v666
    %1214 = vmatprep.subr.mxu0 %v674
    %1215 = vmatpush1.msra.mxu0 %v673
    %1216 = vmatprep.subr.mxu0 %v681
    %1217 = vmatpush1.msra.mxu0 %v680
    %1218 = vmatprep.subr.mxu0 %v688
    %1219 = vmatpush1.msra.mxu0 %v687
    %1220 = vmatprep.subr.mxu0 %v695
    %1221 = vmatpush1.msra.mxu0 %v694
    %1222 = vmatprep.subr.mxu0 %v702
    %1223 = vmatpush1.msra.mxu0 %v701
    %1224 = vmatprep.subr.mxu0 %v709
    %1225 = vmatpush1.msra.mxu0 %v708
    %1226 = vmatprep.subr.mxu0 %v716
    %1227 = vmatpush1.msra.mxu0 %v715
    %1228 = vmatprep.mubr.f32.mxu0 %v46
    %1229 = vmatmul.mubr.f32.gmra.mrb[0].mxu0 %v45
    %v1230 = vpop.f32.mrb[0].mxu0
    %v1231 = vadd.f32 %v1160, %v1230
    %v1232 = vpop.f32.mrb[0].mxu0
    %v1233 = vadd.f32 %v1162, %v1232
    %1234 = vdwg.mxu0
    %1235 = vmatprep.subr.mxu0 %v723
    %1236 = vmatpush1.msra.mxu0 %v722
    %1237 = vmatprep.subr.mxu0 %v730
    %1238 = vmatpush1.msra.mxu0 %v729
    %1239 = vmatprep.subr.mxu0 0.0
    %1240 = vmatpush1.msra.mxu0 0.0
    %1241 = vmatprep.subr.mxu0 0.0
    %1242 = vmatpush1.msra.mxu0 0.0
    %1243 = vmatprep.subr.mxu0 0.0
    %1244 = vmatpush1.msra.mxu0 0.0
    %1245 = vmatprep.subr.mxu0 0.0
    %1246 = vmatpush1.msra.mxu0 0.0
    %1247 = vmatprep.subr.mxu0 0.0
    %1248 = vmatpush1.msra.mxu0 0.0
    %1249 = vmatprep.subr.mxu0 0.0
    %1250 = vmatpush1.msra.mxu0 0.0
    %1251 = vmatprep.subr.mxu0 0.0
    %1252 = vmatpush1.msra.mxu0 0.0
    %1253 = vmatprep.subr.mxu0 0.0
    %1254 = vmatpush1.msra.mxu0 0.0
    %1255 = vmatprep.subr.mxu0 0.0
    %1256 = vmatpush1.msra.mxu0 0.0
    %1257 = vmatprep.subr.mxu0 0.0
    %1258 = vmatpush1.msra.mxu0 0.0
    %1259 = vmatprep.subr.mxu0 0.0
    %1260 = vmatpush1.msra.mxu0 0.0
    %1261 = vmatprep.subr.mxu0 0.0
    %1262 = vmatpush1.msra.mxu0 0.0
    %1263 = vmatprep.subr.mxu0 0.0
    %1264 = vmatpush1.msra.mxu0 0.0
    %1265 = vmatprep.subr.mxu0 0.0
    %1266 = vmatpush1.msra.mxu0 0.0
    %1267 = vmatprep.subr.mxu0 0.0
    %1268 = vmatpush1.msra.mxu0 0.0
    %1269 = vmatprep.subr.mxu0 0.0
    %1270 = vmatpush1.msra.mxu0 0.0
    %1271 = vmatprep.subr.mxu0 0.0
    %1272 = vmatpush1.msra.mxu0 0.0
    %1273 = vmatprep.subr.mxu0 0.0
    %1274 = vmatpush1.msra.mxu0 0.0
    %1275 = vmatprep.subr.mxu0 0.0
    %1276 = vmatpush1.msra.mxu0 0.0
    %1277 = vmatprep.subr.mxu0 0.0
    %1278 = vmatpush1.msra.mxu0 0.0
    %1279 = vmatprep.subr.mxu0 0.0
    %1280 = vmatpush1.msra.mxu0 0.0
    %1281 = vmatprep.subr.mxu0 0.0
    %1282 = vmatpush1.msra.mxu0 0.0
    %1283 = vmatprep.subr.mxu0 0.0
    %1284 = vmatpush1.msra.mxu0 0.0
    %1285 = vmatprep.subr.mxu0 0.0
    %1286 = vmatpush1.msra.mxu0 0.0
    %1287 = vmatprep.subr.mxu0 0.0
    %1288 = vmatpush1.msra.mxu0 0.0
    %1289 = vmatprep.subr.mxu0 0.0
    %1290 = vmatpush1.msra.mxu0 0.0
    %1291 = vmatprep.subr.mxu0 0.0
    %1292 = vmatpush1.msra.mxu0 0.0
    %1293 = vmatprep.subr.mxu0 0.0
    %1294 = vmatpush1.msra.mxu0 0.0
    %1295 = vmatprep.subr.mxu0 0.0
    %1296 = vmatpush1.msra.mxu0 0.0
    %1297 = vmatprep.subr.mxu0 0.0
    %1298 = vmatpush1.msra.mxu0 0.0
    %1299 = vmatprep.mubr.f32.mxu0 0.0
    %1300 = vmatmul.mubr.f32.gmra.mrb[0].mxu0 %v736
    %v1301 = vpop.f32.mrb[0].mxu0
    %v1302 = vadd.f32 %v1231, %v1301
    %v1303 = vpop.f32.mrb[0].mxu0
    %v1304 = vadd.f32 %v1233, %v1303
    %1305 = vdwg.mxu0
    %1306 = vmatprep.subr.mxu0 %v53
    %1307 = vmatpush1.msra.mxu0 %v52
    %1308 = vmatprep.subr.mxu0 %v60
    %1309 = vmatpush1.msra.mxu0 %v59
    %1310 = vmatprep.subr.mxu0 %v67
    %1311 = vmatpush1.msra.mxu0 %v66
    %1312 = vmatprep.subr.mxu0 %v74
    %1313 = vmatpush1.msra.mxu0 %v73
    %1314 = vmatprep.subr.mxu0 %v81
    %1315 = vmatpush1.msra.mxu0 %v80
    %1316 = vmatprep.subr.mxu0 %v88
    %1317 = vmatpush1.msra.mxu0 %v87
    %1318 = vmatprep.subr.mxu0 %v95
    %1319 = vmatpush1.msra.mxu0 %v94
    %1320 = vmatprep.subr.mxu0 %v102
    %1321 = vmatpush1.msra.mxu0 %v101
    %1322 = vmatprep.subr.mxu0 %v109
    %1323 = vmatpush1.msra.mxu0 %v108
    %1324 = vmatprep.subr.mxu0 %v116
    %1325 = vmatpush1.msra.mxu0 %v115
    %1326 = vmatprep.subr.mxu0 %v123
    %1327 = vmatpush1.msra.mxu0 %v122
    %1328 = vmatprep.subr.mxu0 %v130
    %1329 = vmatpush1.msra.mxu0 %v129
    %1330 = vmatprep.subr.mxu0 %v137
    %1331 = vmatpush1.msra.mxu0 %v136
    %1332 = vmatprep.subr.mxu0 %v144
    %1333 = vmatpush1.msra.mxu0 %v143
    %1334 = vmatprep.subr.mxu0 %v151
    %1335 = vmatpush1.msra.mxu0 %v150
    %1336 = vmatprep.subr.mxu0 %v158
    %1337 = vmatpush1.msra.mxu0 %v157
    %1338 = vmatprep.subr.mxu0 %v165
    %1339 = vmatpush1.msra.mxu0 %v164
    %1340 = vmatprep.subr.mxu0 %v172
    %1341 = vmatpush1.msra.mxu0 %v171
    %1342 = vmatprep.subr.mxu0 %v179
    %1343 = vmatpush1.msra.mxu0 %v178
    %1344 = vmatprep.subr.mxu0 %v186
    %1345 = vmatpush1.msra.mxu0 %v185
    %1346 = vmatprep.subr.mxu0 %v193
    %1347 = vmatpush1.msra.mxu0 %v192
    %1348 = vmatprep.subr.mxu0 %v200
    %1349 = vmatpush1.msra.mxu0 %v199
    %1350 = vmatprep.subr.mxu0 %v207
    %1351 = vmatpush1.msra.mxu0 %v206
    %1352 = vmatprep.subr.mxu0 %v214
    %1353 = vmatpush1.msra.mxu0 %v213
    %1354 = vmatprep.subr.mxu0 %v221
    %1355 = vmatpush1.msra.mxu0 %v220
    %1356 = vmatprep.subr.mxu0 %v228
    %1357 = vmatpush1.msra.mxu0 %v227
    %1358 = vmatprep.subr.mxu0 %v235
    %1359 = vmatpush1.msra.mxu0 %v234
    %1360 = vmatprep.subr.mxu0 %v242
    %1361 = vmatpush1.msra.mxu0 %v241
    %1362 = vmatprep.subr.mxu0 %v249
    %1363 = vmatpush1.msra.mxu0 %v248
    %1364 = vmatprep.subr.mxu0 %v256
    %1365 = vmatpush1.msra.mxu0 %v255
    %1366 = vmatprep.subr.mxu0 %v263
    %1367 = vmatpush1.msra.mxu0 %v262
    %1368 = vmatprep.subr.mxu0 %v270
    %1369 = vmatpush1.msra.mxu0 %v269
    %1370 = vmatprep.mubr.f32.mxu0 %v42
    %1371 = vmatmul.mubr.f32.gmra.mrb[0].mxu0 %v41
    %v1372 = vpop.f32.mrb[0].mxu0
    %v1373 = vadd.f32 0.0, %v1372
    %v1374 = vpop.f32.mrb[0].mxu0
    %v1375 = vadd.f32 0.0, %v1374
    %1376 = vdwg.mxu0
    %1377 = vmatprep.subr.mxu0 %v277
    %1378 = vmatpush1.msra.mxu0 %v276
    %1379 = vmatprep.subr.mxu0 %v284
    %1380 = vmatpush1.msra.mxu0 %v283
    %1381 = vmatprep.subr.mxu0 %v291
    %1382 = vmatpush1.msra.mxu0 %v290
    %1383 = vmatprep.subr.mxu0 %v298
    %1384 = vmatpush1.msra.mxu0 %v297
    %1385 = vmatprep.subr.mxu0 %v305
    %1386 = vmatpush1.msra.mxu0 %v304
    %1387 = vmatprep.subr.mxu0 %v312
    %1388 = vmatpush1.msra.mxu0 %v311
    %1389 = vmatprep.subr.mxu0 %v319
    %1390 = vmatpush1.msra.mxu0 %v318
    %1391 = vmatprep.subr.mxu0 %v326
    %1392 = vmatpush1.msra.mxu0 %v325
    %1393 = vmatprep.subr.mxu0 %v333
    %1394 = vmatpush1.msra.mxu0 %v332
    %1395 = vmatprep.subr.mxu0 %v340
    %1396 = vmatpush1.msra.mxu0 %v339
    %1397 = vmatprep.subr.mxu0 %v347
    %1398 = vmatpush1.msra.mxu0 %v346
    %1399 = vmatprep.subr.mxu0 %v354
    %1400 = vmatpush1.msra.mxu0 %v353
    %1401 = vmatprep.subr.mxu0 %v361
    %1402 = vmatpush1.msra.mxu0 %v360
    %1403 = vmatprep.subr.mxu0 %v368
    %1404 = vmatpush1.msra.mxu0 %v367
    %1405 = vmatprep.subr.mxu0 %v375
    %1406 = vmatpush1.msra.mxu0 %v374
    %1407 = vmatprep.subr.mxu0 %v382
    %1408 = vmatpush1.msra.mxu0 %v381
    %1409 = vmatprep.subr.mxu0 %v389
    %1410 = vmatpush1.msra.mxu0 %v388
    %1411 = vmatprep.subr.mxu0 %v396
    %1412 = vmatpush1.msra.mxu0 %v395
    %1413 = vmatprep.subr.mxu0 %v403
    %1414 = vmatpush1.msra.mxu0 %v402
    %1415 = vmatprep.subr.mxu0 %v410
    %1416 = vmatpush1.msra.mxu0 %v409
    %1417 = vmatprep.subr.mxu0 %v417
    %1418 = vmatpush1.msra.mxu0 %v416
    %1419 = vmatprep.subr.mxu0 %v424
    %1420 = vmatpush1.msra.mxu0 %v423
    %1421 = vmatprep.subr.mxu0 %v431
    %1422 = vmatpush1.msra.mxu0 %v430
    %1423 = vmatprep.subr.mxu0 %v438
    %1424 = vmatpush1.msra.mxu0 %v437
    %1425 = vmatprep.subr.mxu0 %v445
    %1426 = vmatpush1.msra.mxu0 %v444
    %1427 = vmatprep.subr.mxu0 %v452
    %1428 = vmatpush1.msra.mxu0 %v451
    %1429 = vmatprep.subr.mxu0 %v459
    %1430 = vmatpush1.msra.mxu0 %v458
    %1431 = vmatprep.subr.mxu0 %v466
    %1432 = vmatpush1.msra.mxu0 %v465
    %1433 = vmatprep.subr.mxu0 %v473
    %1434 = vmatpush1.msra.mxu0 %v472
    %1435 = vmatprep.subr.mxu0 %v480
    %1436 = vmatpush1.msra.mxu0 %v479
    %1437 = vmatprep.subr.mxu0 %v487
    %1438 = vmatpush1.msra.mxu0 %v486
    %1439 = vmatprep.subr.mxu0 %v494
    %1440 = vmatpush1.msra.mxu0 %v493
    %1441 = vmatprep.mubr.f32.mxu0 %v44
    %1442 = vmatmul.mubr.f32.gmra.mrb[0].mxu0 %v43
    %v1443 = vpop.f32.mrb[0].mxu0
    %v1444 = vadd.f32 %v1373, %v1443
    %v1445 = vpop.f32.mrb[0].mxu0
    %v1446 = vadd.f32 %v1375, %v1445
    %1447 = vdwg.mxu0
    %1448 = vmatprep.subr.mxu0 %v501
    %1449 = vmatpush1.msra.mxu0 %v500
    %1450 = vmatprep.subr.mxu0 %v508
    %1451 = vmatpush1.msra.mxu0 %v507
    %1452 = vmatprep.subr.mxu0 %v515
    %1453 = vmatpush1.msra.mxu0 %v514
    %1454 = vmatprep.subr.mxu0 %v522
    %1455 = vmatpush1.msra.mxu0 %v521
    %1456 = vmatprep.subr.mxu0 %v529
    %1457 = vmatpush1.msra.mxu0 %v528
    %1458 = vmatprep.subr.mxu0 %v536
    %1459 = vmatpush1.msra.mxu0 %v535
    %1460 = vmatprep.subr.mxu0 %v543
    %1461 = vmatpush1.msra.mxu0 %v542
    %1462 = vmatprep.subr.mxu0 %v550
    %1463 = vmatpush1.msra.mxu0 %v549
    %1464 = vmatprep.subr.mxu0 %v557
    %1465 = vmatpush1.msra.mxu0 %v556
    %1466 = vmatprep.subr.mxu0 %v564
    %1467 = vmatpush1.msra.mxu0 %v563
    %1468 = vmatprep.subr.mxu0 %v571
    %1469 = vmatpush1.msra.mxu0 %v570
    %1470 = vmatprep.subr.mxu0 %v578
    %1471 = vmatpush1.msra.mxu0 %v577
    %1472 = vmatprep.subr.mxu0 %v585
    %1473 = vmatpush1.msra.mxu0 %v584
    %1474 = vmatprep.subr.mxu0 %v592
    %1475 = vmatpush1.msra.mxu0 %v591
    %1476 = vmatprep.subr.mxu0 %v599
    %1477 = vmatpush1.msra.mxu0 %v598
    %1478 = vmatprep.subr.mxu0 %v606
    %1479 = vmatpush1.msra.mxu0 %v605
    %1480 = vmatprep.subr.mxu0 %v613
    %1481 = vmatpush1.msra.mxu0 %v612
    %1482 = vmatprep.subr.mxu0 %v620
    %1483 = vmatpush1.msra.mxu0 %v619
    %1484 = vmatprep.subr.mxu0 %v627
    %1485 = vmatpush1.msra.mxu0 %v626
    %1486 = vmatprep.subr.mxu0 %v634
    %1487 = vmatpush1.msra.mxu0 %v633
    %1488 = vmatprep.subr.mxu0 %v641
    %1489 = vmatpush1.msra.mxu0 %v640
    %1490 = vmatprep.subr.mxu0 %v648
    %1491 = vmatpush1.msra.mxu0 %v647
    %1492 = vmatprep.subr.mxu0 %v655
    %1493 = vmatpush1.msra.mxu0 %v654
    %1494 = vmatprep.subr.mxu0 %v662
    %1495 = vmatpush1.msra.mxu0 %v661
    %1496 = vmatprep.subr.mxu0 %v669
    %1497 = vmatpush1.msra.mxu0 %v668
    %1498 = vmatprep.subr.mxu0 %v676
    %1499 = vmatpush1.msra.mxu0 %v675
    %1500 = vmatprep.subr.mxu0 %v683
    %1501 = vmatpush1.msra.mxu0 %v682
    %1502 = vmatprep.subr.mxu0 %v690
    %1503 = vmatpush1.msra.mxu0 %v689
    %1504 = vmatprep.subr.mxu0 %v697
    %1505 = vmatpush1.msra.mxu0 %v696
    %1506 = vmatprep.subr.mxu0 %v704
    %1507 = vmatpush1.msra.mxu0 %v703
    %1508 = vmatprep.subr.mxu0 %v711
    %1509 = vmatpush1.msra.mxu0 %v710
    %1510 = vmatprep.subr.mxu0 %v718
    %1511 = vmatpush1.msra.mxu0 %v717
    %1512 = vmatprep.mubr.f32.mxu0 %v46
    %1513 = vmatmul.mubr.f32.gmra.mrb[0].mxu0 %v45
    %v1514 = vpop.f32.mrb[0].mxu0
    %v1515 = vadd.f32 %v1444, %v1514
    %v1516 = vpop.f32.mrb[0].mxu0
    %v1517 = vadd.f32 %v1446, %v1516
    %1518 = vdwg.mxu0
    %1519 = vmatprep.subr.mxu0 %v725
    %1520 = vmatpush1.msra.mxu0 %v724
    %1521 = vmatprep.subr.mxu0 %v732
    %1522 = vmatpush1.msra.mxu0 %v731
    %1523 = vmatprep.subr.mxu0 0.0
    %1524 = vmatpush1.msra.mxu0 0.0
    %1525 = vmatprep.subr.mxu0 0.0
    %1526 = vmatpush1.msra.mxu0 0.0
    %1527 = vmatprep.subr.mxu0 0.0
    %1528 = vmatpush1.msra.mxu0 0.0
    %1529 = vmatprep.subr.mxu0 0.0
    %1530 = vmatpush1.msra.mxu0 0.0
    %1531 = vmatprep.subr.mxu0 0.0
    %1532 = vmatpush1.msra.mxu0 0.0
    %1533 = vmatprep.subr.mxu0 0.0
    %1534 = vmatpush1.msra.mxu0 0.0
    %1535 = vmatprep.subr.mxu0 0.0
    %1536 = vmatpush1.msra.mxu0 0.0
    %1537 = vmatprep.subr.mxu0 0.0
    %1538 = vmatpush1.msra.mxu0 0.0
    %1539 = vmatprep.subr.mxu0 0.0
    %1540 = vmatpush1.msra.mxu0 0.0
    %1541 = vmatprep.subr.mxu0 0.0
    %1542 = vmatpush1.msra.mxu0 0.0
    %1543 = vmatprep.subr.mxu0 0.0
    %1544 = vmatpush1.msra.mxu0 0.0
    %1545 = vmatprep.subr.mxu0 0.0
    %1546 = vmatpush1.msra.mxu0 0.0
    %1547 = vmatprep.subr.mxu0 0.0
    %1548 = vmatpush1.msra.mxu0 0.0
    %1549 = vmatprep.subr.mxu0 0.0
    %1550 = vmatpush1.msra.mxu0 0.0
    %1551 = vmatprep.subr.mxu0 0.0
    %1552 = vmatpush1.msra.mxu0 0.0
    %1553 = vmatprep.subr.mxu0 0.0
    %1554 = vmatpush1.msra.mxu0 0.0
    %1555 = vmatprep.subr.mxu0 0.0
    %1556 = vmatpush1.msra.mxu0 0.0
    %1557 = vmatprep.subr.mxu0 0.0
    %1558 = vmatpush1.msra.mxu0 0.0
    %1559 = vmatprep.subr.mxu0 0.0
    %1560 = vmatpush1.msra.mxu0 0.0
    %1561 = vmatprep.subr.mxu0 0.0
    %1562 = vmatpush1.msra.mxu0 0.0
    %1563 = vmatprep.subr.mxu0 0.0
    %1564 = vmatpush1.msra.mxu0 0.0
    %1565 = vmatprep.subr.mxu0 0.0
    %1566 = vmatpush1.msra.mxu0 0.0
    %1567 = vmatprep.subr.mxu0 0.0
    %1568 = vmatpush1.msra.mxu0 0.0
    %1569 = vmatprep.subr.mxu0 0.0
    %1570 = vmatpush1.msra.mxu0 0.0
    %1571 = vmatprep.subr.mxu0 0.0
    %1572 = vmatpush1.msra.mxu0 0.0
    %1573 = vmatprep.subr.mxu0 0.0
    %1574 = vmatpush1.msra.mxu0 0.0
    %1575 = vmatprep.subr.mxu0 0.0
    %1576 = vmatpush1.msra.mxu0 0.0
    %1577 = vmatprep.subr.mxu0 0.0
    %1578 = vmatpush1.msra.mxu0 0.0
    %1579 = vmatprep.subr.mxu0 0.0
    %1580 = vmatpush1.msra.mxu0 0.0
    %1581 = vmatprep.subr.mxu0 0.0
    %1582 = vmatpush1.msra.mxu0 0.0
    %1583 = vmatprep.mubr.f32.mxu0 0.0
    %1584 = vmatmul.mubr.f32.gmra.mrb[0].mxu0 %v736
    %v1585 = vpop.f32.mrb[0].mxu0
    %v1586 = vadd.f32 %v1515, %v1585
    %v1587 = vpop.f32.mrb[0].mxu0
    %v1588 = vadd.f32 %v1517, %v1587
    %1589 = vdwg.mxu0
    %1590 = vmatprep.subr.mxu0 0.0
    %1591 = vmatpush1.msra.mxu0 %v54
    %1592 = vmatprep.subr.mxu0 0.0
    %1593 = vmatpush1.msra.mxu0 %v61
    %1594 = vmatprep.subr.mxu0 0.0
    %1595 = vmatpush1.msra.mxu0 %v68
    %1596 = vmatprep.subr.mxu0 0.0
    %1597 = vmatpush1.msra.mxu0 %v75
    %1598 = vmatprep.subr.mxu0 0.0
    %1599 = vmatpush1.msra.mxu0 %v82
    %1600 = vmatprep.subr.mxu0 0.0
    %1601 = vmatpush1.msra.mxu0 %v89
    %1602 = vmatprep.subr.mxu0 0.0
    %1603 = vmatpush1.msra.mxu0 %v96
    %1604 = vmatprep.subr.mxu0 0.0
    %1605 = vmatpush1.msra.mxu0 %v103
    %1606 = vmatprep.subr.mxu0 0.0
    %1607 = vmatpush1.msra.mxu0 %v110
    %1608 = vmatprep.subr.mxu0 0.0
    %1609 = vmatpush1.msra.mxu0 %v117
    %1610 = vmatprep.subr.mxu0 0.0
    %1611 = vmatpush1.msra.mxu0 %v124
    %1612 = vmatprep.subr.mxu0 0.0
    %1613 = vmatpush1.msra.mxu0 %v131
    %1614 = vmatprep.subr.mxu0 0.0
    %1615 = vmatpush1.msra.mxu0 %v138
    %1616 = vmatprep.subr.mxu0 0.0
    %1617 = vmatpush1.msra.mxu0 %v145
    %1618 = vmatprep.subr.mxu0 0.0
    %1619 = vmatpush1.msra.mxu0 %v152
    %1620 = vmatprep.subr.mxu0 0.0
    %1621 = vmatpush1.msra.mxu0 %v159
    %1622 = vmatprep.subr.mxu0 0.0
    %1623 = vmatpush1.msra.mxu0 %v166
    %1624 = vmatprep.subr.mxu0 0.0
    %1625 = vmatpush1.msra.mxu0 %v173
    %1626 = vmatprep.subr.mxu0 0.0
    %1627 = vmatpush1.msra.mxu0 %v180
    %1628 = vmatprep.subr.mxu0 0.0
    %1629 = vmatpush1.msra.mxu0 %v187
    %1630 = vmatprep.subr.mxu0 0.0
    %1631 = vmatpush1.msra.mxu0 %v194
    %1632 = vmatprep.subr.mxu0 0.0
    %1633 = vmatpush1.msra.mxu0 %v201
    %1634 = vmatprep.subr.mxu0 0.0
    %1635 = vmatpush1.msra.mxu0 %v208
    %1636 = vmatprep.subr.mxu0 0.0
    %1637 = vmatpush1.msra.mxu0 %v215
    %1638 = vmatprep.subr.mxu0 0.0
    %1639 = vmatpush1.msra.mxu0 %v222
    %1640 = vmatprep.subr.mxu0 0.0
    %1641 = vmatpush1.msra.mxu0 %v229
    %1642 = vmatprep.subr.mxu0 0.0
    %1643 = vmatpush1.msra.mxu0 %v236
    %1644 = vmatprep.subr.mxu0 0.0
    %1645 = vmatpush1.msra.mxu0 %v243
    %1646 = vmatprep.subr.mxu0 0.0
    %1647 = vmatpush1.msra.mxu0 %v250
    %1648 = vmatprep.subr.mxu0 0.0
    %1649 = vmatpush1.msra.mxu0 %v257
    %1650 = vmatprep.subr.mxu0 0.0
    %1651 = vmatpush1.msra.mxu0 %v264
    %1652 = vmatprep.subr.mxu0 0.0
    %1653 = vmatpush1.msra.mxu0 %v271
    %1654 = vmatprep.mubr.f32.mxu0 %v42
    %1655 = vmatmul.mubr.f32.gmra.mrb[0].mxu0 %v41
    %v1656 = vpop.f32.mrb[0].mxu0
    %v1657 = vadd.f32 0.0, %v1656
    %v1658 = vpop.f32.mrb[0].mxu0
    %1659 = vdwg.mxu0
    %1660 = vmatprep.subr.mxu0 0.0
    %1661 = vmatpush1.msra.mxu0 %v278
    %1662 = vmatprep.subr.mxu0 0.0
    %1663 = vmatpush1.msra.mxu0 %v285
    %1664 = vmatprep.subr.mxu0 0.0
    %1665 = vmatpush1.msra.mxu0 %v292
    %1666 = vmatprep.subr.mxu0 0.0
    %1667 = vmatpush1.msra.mxu0 %v299
    %1668 = vmatprep.subr.mxu0 0.0
    %1669 = vmatpush1.msra.mxu0 %v306
    %1670 = vmatprep.subr.mxu0 0.0
    %1671 = vmatpush1.msra.mxu0 %v313
    %1672 = vmatprep.subr.mxu0 0.0
    %1673 = vmatpush1.msra.mxu0 %v320
    %1674 = vmatprep.subr.mxu0 0.0
    %1675 = vmatpush1.msra.mxu0 %v327
    %1676 = vmatprep.subr.mxu0 0.0
    %1677 = vmatpush1.msra.mxu0 %v334
    %1678 = vmatprep.subr.mxu0 0.0
    %1679 = vmatpush1.msra.mxu0 %v341
    %1680 = vmatprep.subr.mxu0 0.0
    %1681 = vmatpush1.msra.mxu0 %v348
    %1682 = vmatprep.subr.mxu0 0.0
    %1683 = vmatpush1.msra.mxu0 %v355
    %1684 = vmatprep.subr.mxu0 0.0
    %1685 = vmatpush1.msra.mxu0 %v362
    %1686 = vmatprep.subr.mxu0 0.0
    %1687 = vmatpush1.msra.mxu0 %v369
    %1688 = vmatprep.subr.mxu0 0.0
    %1689 = vmatpush1.msra.mxu0 %v376
    %1690 = vmatprep.subr.mxu0 0.0
    %1691 = vmatpush1.msra.mxu0 %v383
    %1692 = vmatprep.subr.mxu0 0.0
    %1693 = vmatpush1.msra.mxu0 %v390
    %1694 = vmatprep.subr.mxu0 0.0
    %1695 = vmatpush1.msra.mxu0 %v397
    %1696 = vmatprep.subr.mxu0 0.0
    %1697 = vmatpush1.msra.mxu0 %v404
    %1698 = vmatprep.subr.mxu0 0.0
    %1699 = vmatpush1.msra.mxu0 %v411
    %1700 = vmatprep.subr.mxu0 0.0
    %1701 = vmatpush1.msra.mxu0 %v418
    %1702 = vmatprep.subr.mxu0 0.0
    %1703 = vmatpush1.msra.mxu0 %v425
    %1704 = vmatprep.subr.mxu0 0.0
    %1705 = vmatpush1.msra.mxu0 %v432
    %1706 = vmatprep.subr.mxu0 0.0
    %1707 = vmatpush1.msra.mxu0 %v439
    %1708 = vmatprep.subr.mxu0 0.0
    %1709 = vmatpush1.msra.mxu0 %v446
    %1710 = vmatprep.subr.mxu0 0.0
    %1711 = vmatpush1.msra.mxu0 %v453
    %1712 = vmatprep.subr.mxu0 0.0
    %1713 = vmatpush1.msra.mxu0 %v460
    %1714 = vmatprep.subr.mxu0 0.0
    %1715 = vmatpush1.msra.mxu0 %v467
    %1716 = vmatprep.subr.mxu0 0.0
    %1717 = vmatpush1.msra.mxu0 %v474
    %1718 = vmatprep.subr.mxu0 0.0
    %1719 = vmatpush1.msra.mxu0 %v481
    %1720 = vmatprep.subr.mxu0 0.0
    %1721 = vmatpush1.msra.mxu0 %v488
    %1722 = vmatprep.subr.mxu0 0.0
    %1723 = vmatpush1.msra.mxu0 %v495
    %1724 = vmatprep.mubr.f32.mxu0 %v44
    %1725 = vmatmul.mubr.f32.gmra.mrb[0].mxu0 %v43
    %v1726 = vpop.f32.mrb[0].mxu0
    %v1727 = vadd.f32 %v1657, %v1726
    %v1728 = vpop.f32.mrb[0].mxu0
    %1729 = vdwg.mxu0
    %1730 = vmatprep.subr.mxu0 0.0
    %1731 = vmatpush1.msra.mxu0 %v502
    %1732 = vmatprep.subr.mxu0 0.0
    %1733 = vmatpush1.msra.mxu0 %v509
    %1734 = vmatprep.subr.mxu0 0.0
    %1735 = vmatpush1.msra.mxu0 %v516
    %1736 = vmatprep.subr.mxu0 0.0
    %1737 = vmatpush1.msra.mxu0 %v523
    %1738 = vmatprep.subr.mxu0 0.0
    %1739 = vmatpush1.msra.mxu0 %v530
    %1740 = vmatprep.subr.mxu0 0.0
    %1741 = vmatpush1.msra.mxu0 %v537
    %1742 = vmatprep.subr.mxu0 0.0
    %1743 = vmatpush1.msra.mxu0 %v544
    %1744 = vmatprep.subr.mxu0 0.0
    %1745 = vmatpush1.msra.mxu0 %v551
    %1746 = vmatprep.subr.mxu0 0.0
    %1747 = vmatpush1.msra.mxu0 %v558
    %1748 = vmatprep.subr.mxu0 0.0
    %1749 = vmatpush1.msra.mxu0 %v565
    %1750 = vmatprep.subr.mxu0 0.0
    %1751 = vmatpush1.msra.mxu0 %v572
    %1752 = vmatprep.subr.mxu0 0.0
    %1753 = vmatpush1.msra.mxu0 %v579
    %1754 = vmatprep.subr.mxu0 0.0
    %1755 = vmatpush1.msra.mxu0 %v586
    %1756 = vmatprep.subr.mxu0 0.0
    %1757 = vmatpush1.msra.mxu0 %v593
    %1758 = vmatprep.subr.mxu0 0.0
    %1759 = vmatpush1.msra.mxu0 %v600
    %1760 = vmatprep.subr.mxu0 0.0
    %1761 = vmatpush1.msra.mxu0 %v607
    %1762 = vmatprep.subr.mxu0 0.0
    %1763 = vmatpush1.msra.mxu0 %v614
    %1764 = vmatprep.subr.mxu0 0.0
    %1765 = vmatpush1.msra.mxu0 %v621
    %1766 = vmatprep.subr.mxu0 0.0
    %1767 = vmatpush1.msra.mxu0 %v628
    %1768 = vmatprep.subr.mxu0 0.0
    %1769 = vmatpush1.msra.mxu0 %v635
    %1770 = vmatprep.subr.mxu0 0.0
    %1771 = vmatpush1.msra.mxu0 %v642
    %1772 = vmatprep.subr.mxu0 0.0
    %1773 = vmatpush1.msra.mxu0 %v649
    %1774 = vmatprep.subr.mxu0 0.0
    %1775 = vmatpush1.msra.mxu0 %v656
    %1776 = vmatprep.subr.mxu0 0.0
    %1777 = vmatpush1.msra.mxu0 %v663
    %1778 = vmatprep.subr.mxu0 0.0
    %1779 = vmatpush1.msra.mxu0 %v670
    %1780 = vmatprep.subr.mxu0 0.0
    %1781 = vmatpush1.msra.mxu0 %v677
    %1782 = vmatprep.subr.mxu0 0.0
    %1783 = vmatpush1.msra.mxu0 %v684
    %1784 = vmatprep.subr.mxu0 0.0
    %1785 = vmatpush1.msra.mxu0 %v691
    %1786 = vmatprep.subr.mxu0 0.0
    %1787 = vmatpush1.msra.mxu0 %v698
    %1788 = vmatprep.subr.mxu0 0.0
    %1789 = vmatpush1.msra.mxu0 %v705
    %1790 = vmatprep.subr.mxu0 0.0
    %1791 = vmatpush1.msra.mxu0 %v712
    %1792 = vmatprep.subr.mxu0 0.0
    %1793 = vmatpush1.msra.mxu0 %v719
    %1794 = vmatprep.mubr.f32.mxu0 %v46
    %1795 = vmatmul.mubr.f32.gmra.mrb[0].mxu0 %v45
    %v1796 = vpop.f32.mrb[0].mxu0
    %v1797 = vadd.f32 %v1727, %v1796
    %v1798 = vpop.f32.mrb[0].mxu0
    %1799 = vdwg.mxu0
    %1800 = vmatprep.subr.mxu0 0.0
    %1801 = vmatpush1.msra.mxu0 %v726
    %1802 = vmatprep.subr.mxu0 0.0
    %1803 = vmatpush1.msra.mxu0 %v733
    %1804 = vmatprep.subr.mxu0 0.0
    %1805 = vmatpush1.msra.mxu0 0.0
    %1806 = vmatprep.subr.mxu0 0.0
    %1807 = vmatpush1.msra.mxu0 0.0
    %1808 = vmatprep.subr.mxu0 0.0
    %1809 = vmatpush1.msra.mxu0 0.0
    %1810 = vmatprep.subr.mxu0 0.0
    %1811 = vmatpush1.msra.mxu0 0.0
    %1812 = vmatprep.subr.mxu0 0.0
    %1813 = vmatpush1.msra.mxu0 0.0
    %1814 = vmatprep.subr.mxu0 0.0
    %1815 = vmatpush1.msra.mxu0 0.0
    %1816 = vmatprep.subr.mxu0 0.0
    %1817 = vmatpush1.msra.mxu0 0.0
    %1818 = vmatprep.subr.mxu0 0.0
    %1819 = vmatpush1.msra.mxu0 0.0
    %1820 = vmatprep.subr.mxu0 0.0
    %1821 = vmatpush1.msra.mxu0 0.0
    %1822 = vmatprep.subr.mxu0 0.0
    %1823 = vmatpush1.msra.mxu0 0.0
    %1824 = vmatprep.subr.mxu0 0.0
    %1825 = vmatpush1.msra.mxu0 0.0
    %1826 = vmatprep.subr.mxu0 0.0
    %1827 = vmatpush1.msra.mxu0 0.0
    %1828 = vmatprep.subr.mxu0 0.0
    %1829 = vmatpush1.msra.mxu0 0.0
    %1830 = vmatprep.subr.mxu0 0.0
    %1831 = vmatpush1.msra.mxu0 0.0
    %1832 = vmatprep.subr.mxu0 0.0
    %1833 = vmatpush1.msra.mxu0 0.0
    %1834 = vmatprep.subr.mxu0 0.0
    %1835 = vmatpush1.msra.mxu0 0.0
    %1836 = vmatprep.subr.mxu0 0.0
    %1837 = vmatpush1.msra.mxu0 0.0
    %1838 = vmatprep.subr.mxu0 0.0
    %1839 = vmatpush1.msra.mxu0 0.0
    %1840 = vmatprep.subr.mxu0 0.0
    %1841 = vmatpush1.msra.mxu0 0.0
    %1842 = vmatprep.subr.mxu0 0.0
    %1843 = vmatpush1.msra.mxu0 0.0
    %1844 = vmatprep.subr.mxu0 0.0
    %1845 = vmatpush1.msra.mxu0 0.0
    %1846 = vmatprep.subr.mxu0 0.0
    %1847 = vmatpush1.msra.mxu0 0.0
    %1848 = vmatprep.subr.mxu0 0.0
    %1849 = vmatpush1.msra.mxu0 0.0
    %1850 = vmatprep.subr.mxu0 0.0
    %1851 = vmatpush1.msra.mxu0 0.0
    %1852 = vmatprep.subr.mxu0 0.0
    %1853 = vmatpush1.msra.mxu0 0.0
    %1854 = vmatprep.subr.mxu0 0.0
    %1855 = vmatpush1.msra.mxu0 0.0
    %1856 = vmatprep.subr.mxu0 0.0
    %1857 = vmatpush1.msra.mxu0 0.0
    %1858 = vmatprep.subr.mxu0 0.0
    %1859 = vmatpush1.msra.mxu0 0.0
    %1860 = vmatprep.subr.mxu0 0.0
    %1861 = vmatpush1.msra.mxu0 0.0
    %1862 = vmatprep.subr.mxu0 0.0
    %1863 = vmatpush1.msra.mxu0 0.0
    %1864 = vmatprep.mubr.f32.mxu0 0.0
    %1865 = vmatmul.mubr.f32.gmra.mrb[0].mxu0 %v736
    %v1866 = vpop.f32.mrb[0].mxu0
    %v1867 = vadd.f32 %v1797, %v1866
    %v1868 = vpop.f32.mrb[0].mxu0
    %1869 = vdwg.mxu0
    %v1870 = vmul.f32 %v1018, %v41
    %v1871 = vmul.f32 %v1020, %v42
    %v1872 = vmul.f32 %v1302, %v43
    %v1873 = vmul.f32 %v1304, %v44
    %v1874 = vmul.f32 %v1586, %v45
    %v1875 = vmul.f32 %v1588, %v46
    %v1876 = vmul.f32 %v1867, %v47
    %v1877 = vadd.f32 %v1870, %v1871
    %v1878 = vadd.f32 %v1877, %v1872
    %v1879 = vadd.f32 %v1878, %v1873
    %v1880 = vadd.f32 %v1879, %v1874
    %v1881 = vadd.f32 %v1880, %v1875
    %v1882 = vsel %vm734, %v1876, 0.0
    %v1883 = vadd.f32 %v1881, %v1882
    %1884 = vadd.xlane.f32.xlu0 %v1883
    %v1885 = vpop.xlane.xlu0 %1884
    %v1886 = vmul.f32 %v1885, -0.5
    %s1887 = sld [smem:[#allocation2]]
    %v1888 = vstv %s1887
    %v1889 = vsub.f32 %v1886, %v1888
    %vm1890 = vcmask 7168
    %1891 = vst.msk [vmem:[%s3] sm:$0xff] %vm1890, %v1889
    // Predicated region
    $region22: #{tpu_custom_call.1} parent=1 // pred_check
      _
    $region23: #{tpu_custom_call.1} parent=1 // pred_check_branch
      %1893 = sbr.rel (0) target = $region25
    $region24: #{tpu_custom_call.1} parent=1 // pred_region
      _
    $region25: #{tpu_custom_call.1} parent=1 // pred_fallthru
      _
    // Predicated region
    $region26: #{tpu_custom_call.1} parent=1 // pred_check
      _
    $region27: #{tpu_custom_call.1} parent=1 // pred_check_branch
      %1895 = sbr.rel (0) target = $region29
    $region28: #{tpu_custom_call.1} parent=1 // pred_region
      _
    $region29: #{tpu_custom_call.1} parent=1 // pred_fallthru
      _
    %1896 = vsyncpa [#allocation4], 1
    %1897 = vsyncpa [#allocation6], 1

</llo_original>
